<compile_context>
chip_gen: v5e
topology: v5e:2x2
jax: 0.10.0
libtpu: 0.0.40
codegen_flags: <defaults>
</compile_context>

<pallas_src>
import jax
import jax.numpy as jnp
from jax.experimental import pallas as pl
from jax.experimental.pallas import tpu as pltpu

DIM = 32  # forced by extra_linear_layer = nn.Linear(32, 2*dim) applied to a (.., dim) tensor


def _fused_kernel(imgT_ref, txt1_ref, txt2_ref,
                  w1i_ref, w1t_t_ref, b1_ref,
                  wf_ref, bf_ref, w3_ref, b3_ref,
                  score_ref):
    """Both branches of GatedFusionGlobal.forward for one tile of img rows (transposed layout).

    imgT_ref:  (D, TB)   img tile, features on sublanes, rows on lanes
    txt*_ref:  (Bt*, D)
    w1i:       (D, D)    fc_1[0] img-half, original (out, in) layout -> a^T = w1i @ img^T
    w1t_t:     (D, D)    fc_1[0] txt-half, pre-transposed -> b_txt = txt @ w1t_t
    b1:        (D, 1)    fc_1[0] bias as a column
    wf:        (D, D)    folded (fc_out[0] o extra_linear) weight, (out, in) layout
    bf:        (D, 1)    folded bias as a column
    w3:        (1, D)    fc_out[3] weight (PyTorch layout)
    b3:        (1, 1)
    score_ref: (2, TB)   row 0 = branch(txt1), row 1 = branch(txt2)
    """
    imgT = imgT_ref[...]                                                    # (D, TB)
    # Shared projection a^T = W1_img @ img^T  (== (img @ W1_img^T)^T)
    aT = jnp.dot(w1i_ref[...], imgT, preferred_element_type=jnp.float32)    # (D, TB)
    b1 = b1_ref[...]                                                        # (D, 1)
    wf = wf_ref[...]                                                        # (D, D)
    bf = bf_ref[...]                                                        # (D, 1)
    w3 = w3_ref[...]                                                        # (1, D)
    b3 = b3_ref[...]                                                        # (1, 1)

    def branch(txt):                                                        # txt: (Bt, D)
        # gate^T[j, i] = sigmoid(<txt_j, img_i>)  -- plain MXU matmul, lane-dense
        gateT = jax.nn.sigmoid(
            jnp.dot(txt, imgT, preferred_element_type=jnp.float32))         # (Bt, TB)
        # txt @ W1_txt^T
        btxt = jnp.dot(txt, w1t_t_ref[...],
                       preferred_element_type=jnp.float32)                  # (Bt, D)
        # fc_1(gated concat) decomposed exactly: gate*(a_i + b_j) + b1, then ReLU.
        # Layout (Bt, D, TB): last two dims 32x256 -> fully lane/sublane dense.
        pre = (gateT[:, None, :] * (aT[None, :, :] + btxt[:, :, None])
               + b1[None, :, :])                                            # (Bt, D, TB)
        coT = jnp.mean(jax.nn.relu(pre), axis=0) + imgT                     # (D, TB)
        # l2norm along the feature (sublane) dim; eps placement matches the reference.
        norm = jnp.sqrt(jnp.sum(coT * coT, axis=0, keepdims=True)) + 1e-8   # (1, TB)
        coT = coT * pl.reciprocal(norm, approx=False)
        # folded (extra_linear_layer -> fc_out[0]) + ReLU
        hT = jax.nn.relu(
            jnp.dot(wf, coT, preferred_element_type=jnp.float32) + bf)      # (D, TB)
        # fc_out[3] -> lane-dense (1, TB) scores
        z = jnp.dot(w3, hT, preferred_element_type=jnp.float32) + b3        # (1, TB)
        return jax.nn.sigmoid(z)

    s1 = branch(txt1_ref[...])                                              # (1, TB)
    s2 = branch(txt2_ref[...])                                              # (1, TB)
    score_ref[...] = jnp.concatenate([s1, s2], axis=0)                      # (2, TB)


def _prep_kernel_params(p):
    """Fold extra_linear_layer into fc_out[0] and orient weights for the transposed layout."""
    wfold = p["w0"] @ p["wex"]                 # (D, 2D) @ (2D, D) -> (D, D), (out, in)
    bfold = p["bex"] @ p["w0"].T + p["b0"]     # (1, 2D) @ (2D, D) + (1, D) -> (1, D)
    return dict(
        w1i=p["w1_img"],                       # (D, D)  original (out, in) layout
        w1t_t=p["w1_txt"].T,                   # (D, D)  pre-transposed
        b1_col=p["b1"].T,                      # (D, 1)
        wf=wfold,                              # (D, D)  original (out, in) layout
        bf_col=bfold.T,                        # (D, 1)
        w3=p["w3"],                            # (1, D)
        b3=p["b3"],                            # (1, 1)
    )


def gated_fusion_global(img, txt1, txt2, params, *, tile_b=256):
    """Equivalent of GatedFusionGlobal.forward(img, txt1, txt2, get_score=True)."""
    b1_rows, d = img.shape
    assert d == DIM, "extra_linear_layer = nn.Linear(32, 2*dim) forces dim == 32"
    kp = _prep_kernel_params(params)

    # Transpose img on the host (tiny XLA op) so the whole kernel is lane-dense.
    img_t = img.T                                      # (D, B1)
    if b1_rows <= tile_b:
        tb = b1_rows
        b1_pad = b1_rows
    else:
        tb = tile_b                                    # multiple of 8 and 128
        b1_pad = int(pl.cdiv(b1_rows, tb)) * tb
        img_t = jnp.pad(img_t, ((0, 0), (0, b1_pad - b1_rows)))

    grid = (b1_pad // tb,)

    def const_spec(shape):
        # Whole-array block, constant block index -> stays VMEM-resident across grid steps.
        n = len(shape)
        return pl.BlockSpec(shape, lambda i: (0,) * n)

    out = pl.pallas_call(
        _fused_kernel,
        out_shape=jax.ShapeDtypeStruct((2, b1_pad), jnp.float32),
        grid_spec=pltpu.PrefetchScalarGridSpec(
            num_scalar_prefetch=0,
            grid=grid,
            in_specs=[
                pl.BlockSpec((DIM, tb), lambda i: (0, i)),   # img^T tile (lane-dense)
                const_spec(txt1.shape),                      # txt1 (resident)
                const_spec(txt2.shape),                      # txt2 (resident)
                const_spec((DIM, DIM)),                      # W1_img
                const_spec((DIM, DIM)),                      # W1_txt^T
                const_spec((DIM, 1)),                        # b1 column
                const_spec((DIM, DIM)),                      # W_fold
                const_spec((DIM, 1)),                        # b_fold column
                const_spec((1, DIM)),                        # w3
                const_spec((1, 1)),                          # b3
            ],
            out_specs=pl.BlockSpec((2, tb), lambda i: (0, i)),   # lane-dense scores
        ),
        compiler_params=pltpu.CompilerParams(
            dimension_semantics=("parallel",)),
    )(img_t, txt1, txt2,
      kp["w1i"], kp["w1t_t"], kp["b1_col"],
      kp["wf"], kp["bf_col"], kp["w3"], kp["b3"])

    # fusion_func == 'concat' on the squeezed (B1,) scores -> (2*B1,)
    return jnp.concatenate([out[0, :b1_rows], out[1, :b1_rows]], axis=-1)


# -------------------- pure-JAX reference (mirrors the PyTorch code) --------------------
def _ref_forward(img, txt1, txt2, p):
    def branch(img, txt):
        b1, d = img.shape
        bt = txt.shape[0]
        v1 = jnp.broadcast_to(img[:, None, :], (b1, bt, d))
        k2 = jnp.broadcast_to(txt[None, :, :], (b1, bt, d))
        gate = jax.nn.sigmoid(jnp.sum(v1 * k2, axis=-1))[..., None]
        fused = jnp.concatenate([v1, k2], axis=-1) * gate
        w1 = jnp.concatenate([p["w1_img"], p["w1_txt"]], axis=1)
        co = jax.nn.relu(fused @ w1.T + p["b1"][0]) + v1
        co = co.mean(axis=1)
        co = co / (jnp.sqrt((co ** 2).sum(-1, keepdims=True)) + 1e-8)
        x2 = co @ p["wex"].T + p["bex"][0]
        h = jax.nn.relu(x2 @ p["w0"].T + p["b0"][0])
        return jax.nn.sigmoid(h @ p["w3"][0] + p["b3"][0, 0])
    return jnp.concatenate([branch(img, txt1), branch(img, txt2)], axis=-1)


def _init_params(key):
    r = (6.0 ** 0.5) / ((DIM + DIM) ** 0.5)
    ks = jax.random.split(key, 6)
    w1 = jax.random.uniform(ks[0], (DIM, 2 * DIM), jnp.float32, -r, r)   # fc_1[0].weight
    return dict(
        w1_img=w1[:, :DIM],
        w1_txt=w1[:, DIM:],
        b1=jnp.zeros((1, DIM), jnp.float32),                             # fc_1[0].bias = 0
        wex=jax.random.uniform(ks[1], (2 * DIM, DIM), jnp.float32, -r, r),    # extra_linear
        bex=jax.random.uniform(ks[2], (1, 2 * DIM), jnp.float32, -r, r),
        w0=jax.random.uniform(ks[3], (DIM, 2 * DIM), jnp.float32, -r, r),     # fc_out[0]
        b0=jnp.zeros((1, DIM), jnp.float32),
        w3=jax.random.uniform(ks[4], (1, DIM), jnp.float32, -r, r),           # fc_out[3]
        b3=jnp.zeros((1, 1), jnp.float32),
    )


if __name__ == "__main__":
    key = jax.random.PRNGKey(0)
    kp, ki, kt1, kt2, kbig = jax.random.split(key, 5)

    params = _init_params(kp)

    # Small shapes consistent with the module: img (B1, 32), txt (Bt, 32).
    B1, B2_1, B2_2 = 4, 8, 6
    img = jax.random.normal(ki, (B1, DIM), jnp.float32)
    txt1 = jax.random.normal(kt1, (B2_1, DIM), jnp.float32)
    txt2 = jax.random.normal(kt2, (B2_2, DIM), jnp.float32)

    score = jax.block_until_ready(gated_fusion_global(img, txt1, txt2, params))
    ref = _ref_forward(img, txt1, txt2, params)
    assert score.shape == (2 * B1,)
    assert jnp.allclose(score, ref, atol=1e-5, rtol=1e-5), (score, ref)

    # Larger batch to exercise the row grid + padding + parallel axis path.
    Bbig = 300
    img_big = jax.random.normal(kbig, (Bbig, DIM), jnp.float32)
    score_big = jax.block_until_ready(gated_fusion_global(img_big, txt1, txt2, params))
    ref_big = _ref_forward(img_big, txt1, txt2, params)
    assert score_big.shape == (2 * Bbig,)
    assert jnp.allclose(score_big, ref_big, atol=1e-5, rtol=1e-5)

    print("KERNEL_OK")
</pallas_src>

<mosaic_0001>
module attributes {stable_mosaic.version = 11 : i64} {
  func.func @_fused_kernel(%arg0: i32, %arg1: memref<32x4xf32, #tpu.memory_space<vmem>>, %arg2: memref<8x32xf32, #tpu.memory_space<vmem>>, %arg3: memref<6x32xf32, #tpu.memory_space<vmem>>, %arg4: memref<32x32xf32, #tpu.memory_space<vmem>>, %arg5: memref<32x32xf32, #tpu.memory_space<vmem>>, %arg6: memref<32x1xf32, #tpu.memory_space<vmem>>, %arg7: memref<32x32xf32, #tpu.memory_space<vmem>>, %arg8: memref<32x1xf32, #tpu.memory_space<vmem>>, %arg9: memref<1x32xf32, #tpu.memory_space<vmem>>, %arg10: memref<1x1xf32, #tpu.memory_space<vmem>>, %arg11: memref<2x4xf32, #tpu.memory_space<vmem>>) attributes {dimension_semantics = [#tpu.dimension_semantics<parallel>], iteration_bounds = array<i64: 1>, scalar_prefetch = 0 : i64, scratch_operands = 0 : i64, tpu.core_type = #tpu.core_type<tc>, window_params = [{transform_indices = @transform_0, window_bounds = array<i64: 32, 4>}, {pipeline_mode = #tpu.pipeline_mode<synchronous>, transform_indices = @transform_1, window_bounds = array<i64: 8, 32>}, {pipeline_mode = #tpu.pipeline_mode<synchronous>, transform_indices = @transform_2, window_bounds = array<i64: 6, 32>}, {pipeline_mode = #tpu.pipeline_mode<synchronous>, transform_indices = @transform_3, window_bounds = array<i64: 32, 32>}, {pipeline_mode = #tpu.pipeline_mode<synchronous>, transform_indices = @transform_4, window_bounds = array<i64: 32, 32>}, {pipeline_mode = #tpu.pipeline_mode<synchronous>, transform_indices = @transform_5, window_bounds = array<i64: 32, 1>}, {pipeline_mode = #tpu.pipeline_mode<synchronous>, transform_indices = @transform_6, window_bounds = array<i64: 32, 32>}, {pipeline_mode = #tpu.pipeline_mode<synchronous>, transform_indices = @transform_7, window_bounds = array<i64: 32, 1>}, {pipeline_mode = #tpu.pipeline_mode<synchronous>, transform_indices = @transform_8, window_bounds = array<i64: 1, 32>}, {pipeline_mode = #tpu.pipeline_mode<synchronous>, transform_indices = @transform_9, window_bounds = array<i64: 1, 1>}, {transform_indices = @transform_10, window_bounds = array<i64: 2, 4>}]} {
    %c0 = arith.constant 0 : index
    %c0_0 = arith.constant 0 : index
    %0 = vector.load %arg1[%c0, %c0_0] : memref<32x4xf32, #tpu.memory_space<vmem>>, vector<32x4xf32>
    %c0_1 = arith.constant 0 : index
    %c0_2 = arith.constant 0 : index
    %1 = vector.load %arg4[%c0_1, %c0_2] : memref<32x32xf32, #tpu.memory_space<vmem>>, vector<32x32xf32>
    %cst = arith.constant dense<0.000000e+00> : vector<32x4xf32>
    %2 = tpu.matmul %1, %0, %cst {dimension_numbers = #tpu.dot_dimension_numbers<[1], [0], [0], [1], [0, 0, 1, 1], [], []>} : vector<32x32xf32>, vector<32x4xf32>, vector<32x4xf32> -> vector<32x4xf32>
    %c0_3 = arith.constant 0 : index
    %c0_4 = arith.constant 0 : index
    %3 = vector.load %arg6[%c0_3, %c0_4] : memref<32x1xf32, #tpu.memory_space<vmem>>, vector<32x1xf32>
    %c0_5 = arith.constant 0 : index
    %c0_6 = arith.constant 0 : index
    %4 = vector.load %arg7[%c0_5, %c0_6] : memref<32x32xf32, #tpu.memory_space<vmem>>, vector<32x32xf32>
    %c0_7 = arith.constant 0 : index
    %c0_8 = arith.constant 0 : index
    %5 = vector.load %arg8[%c0_7, %c0_8] : memref<32x1xf32, #tpu.memory_space<vmem>>, vector<32x1xf32>
    %c0_9 = arith.constant 0 : index
    %c0_10 = arith.constant 0 : index
    %6 = vector.load %arg9[%c0_9, %c0_10] : memref<1x32xf32, #tpu.memory_space<vmem>>, vector<1x32xf32>
    %c0_11 = arith.constant 0 : index
    %c0_12 = arith.constant 0 : index
    %7 = vector.load %arg10[%c0_11, %c0_12] : memref<1x1xf32, #tpu.memory_space<vmem>>, vector<1x1xf32>
    %c0_13 = arith.constant 0 : index
    %c0_14 = arith.constant 0 : index
    %8 = vector.load %arg2[%c0_13, %c0_14] : memref<8x32xf32, #tpu.memory_space<vmem>>, vector<8x32xf32>
    %cst_15 = arith.constant dense<0.000000e+00> : vector<8x4xf32>
    %9 = tpu.matmul %8, %0, %cst_15 {dimension_numbers = #tpu.dot_dimension_numbers<[1], [0], [0], [1], [0, 0, 1, 1], [], []>} : vector<8x32xf32>, vector<32x4xf32>, vector<8x4xf32> -> vector<8x4xf32>
    %10 = arith.negf %9 : vector<8x4xf32>
    %11 = math.exp %10 : vector<8x4xf32>
    %cst_16 = arith.constant 1.000000e+00 : f32
    %12 = vector.broadcast %cst_16 : f32 to vector<8x4xf32>
    %13 = arith.addf %12, %11 : vector<8x4xf32>
    %14 = arith.divf %12, %13 : vector<8x4xf32>
    %c0_17 = arith.constant 0 : index
    %c0_18 = arith.constant 0 : index
    %15 = vector.load %arg5[%c0_17, %c0_18] : memref<32x32xf32, #tpu.memory_space<vmem>>, vector<32x32xf32>
    %cst_19 = arith.constant dense<0.000000e+00> : vector<8x32xf32>
    %16 = tpu.matmul %8, %15, %cst_19 {dimension_numbers = #tpu.dot_dimension_numbers<[1], [0], [0], [1], [0, 0, 1, 1], [], []>} : vector<8x32xf32>, vector<32x32xf32>, vector<8x32xf32> -> vector<8x32xf32>
    %17 = vector.shape_cast %14 : vector<8x4xf32> to vector<8x1x4xf32>
    %18 = vector.shape_cast %2 : vector<32x4xf32> to vector<1x32x4xf32>
    %19 = vector.shape_cast %16 : vector<8x32xf32> to vector<8x32x1xf32>
    %20 = vector.broadcast %18 : vector<1x32x4xf32> to vector<8x32x4xf32>
    %21 = vector.broadcast %19 : vector<8x32x1xf32> to vector<8x32x4xf32>
    %22 = arith.addf %20, %21 : vector<8x32x4xf32>
    %23 = vector.broadcast %17 : vector<8x1x4xf32> to vector<8x32x4xf32>
    %24 = arith.mulf %23, %22 : vector<8x32x4xf32>
    %25 = vector.shape_cast %3 : vector<32x1xf32> to vector<1x32x1xf32>
    %26 = vector.broadcast %25 : vector<1x32x1xf32> to vector<8x32x4xf32>
    %27 = arith.addf %24, %26 : vector<8x32x4xf32>
    %cst_20 = arith.constant 0.000000e+00 : f32
    %28 = vector.broadcast %cst_20 : f32 to vector<8x32x4xf32>
    %29 = arith.maximumf %27, %28 : vector<8x32x4xf32>
    %cst_21 = arith.constant dense<0.000000e+00> : vector<32x4xf32>
    %30 = vector.multi_reduction <add>, %29, %cst_21 [0] : vector<8x32x4xf32> to vector<32x4xf32>
    %cst_22 = arith.constant 8.000000e+00 : f32
    %31 = vector.broadcast %cst_22 : f32 to vector<32x4xf32>
    %32 = arith.divf %30, %31 : vector<32x4xf32>
    %33 = arith.addf %32, %0 : vector<32x4xf32>
    %34 = arith.mulf %33, %33 : vector<32x4xf32>
    %cst_23 = arith.constant dense<0.000000e+00> : vector<4xf32>
    %35 = vector.multi_reduction <add>, %34, %cst_23 [0] : vector<32x4xf32> to vector<4xf32>
    %36 = vector.shape_cast %35 : vector<4xf32> to vector<1x4xf32>
    %37 = math.sqrt %36 : vector<1x4xf32>
    %cst_24 = arith.constant 9.99999993E-9 : f32
    %38 = vector.broadcast %cst_24 : f32 to vector<1x4xf32>
    %39 = arith.addf %37, %38 : vector<1x4xf32>
    %40 = tpu.reciprocal %39 : vector<1x4xf32> -> vector<1x4xf32>
    %41 = vector.broadcast %40 : vector<1x4xf32> to vector<32x4xf32>
    %42 = arith.mulf %33, %41 : vector<32x4xf32>
    %cst_25 = arith.constant dense<0.000000e+00> : vector<32x4xf32>
    %43 = tpu.matmul %4, %42, %cst_25 {dimension_numbers = #tpu.dot_dimension_numbers<[1], [0], [0], [1], [0, 0, 1, 1], [], []>} : vector<32x32xf32>, vector<32x4xf32>, vector<32x4xf32> -> vector<32x4xf32>
    %44 = vector.broadcast %5 : vector<32x1xf32> to vector<32x4xf32>
    %45 = arith.addf %43, %44 : vector<32x4xf32>
    %cst_26 = arith.constant 0.000000e+00 : f32
    %46 = vector.broadcast %cst_26 : f32 to vector<32x4xf32>
    %47 = arith.maximumf %45, %46 : vector<32x4xf32>
    %cst_27 = arith.constant dense<0.000000e+00> : vector<1x4xf32>
    %48 = tpu.matmul %6, %47, %cst_27 {dimension_numbers = #tpu.dot_dimension_numbers<[1], [0], [0], [1], [0, 0, 1, 1], [], []>} : vector<1x32xf32>, vector<32x4xf32>, vector<1x4xf32> -> vector<1x4xf32>
    %49 = vector.broadcast %7 : vector<1x1xf32> to vector<1x4xf32>
    %50 = arith.addf %48, %49 : vector<1x4xf32>
    %51 = arith.negf %50 : vector<1x4xf32>
    %52 = math.exp %51 : vector<1x4xf32>
    %cst_28 = arith.constant 1.000000e+00 : f32
    %53 = vector.broadcast %cst_28 : f32 to vector<1x4xf32>
    %54 = arith.addf %53, %52 : vector<1x4xf32>
    %55 = arith.divf %53, %54 : vector<1x4xf32>
    %c0_29 = arith.constant 0 : index
    %c0_30 = arith.constant 0 : index
    %56 = vector.load %arg3[%c0_29, %c0_30] : memref<6x32xf32, #tpu.memory_space<vmem>>, vector<6x32xf32>
    %cst_31 = arith.constant dense<0.000000e+00> : vector<6x4xf32>
    %57 = tpu.matmul %56, %0, %cst_31 {dimension_numbers = #tpu.dot_dimension_numbers<[1], [0], [0], [1], [0, 0, 1, 1], [], []>} : vector<6x32xf32>, vector<32x4xf32>, vector<6x4xf32> -> vector<6x4xf32>
    %58 = arith.negf %57 : vector<6x4xf32>
    %59 = math.exp %58 : vector<6x4xf32>
    %cst_32 = arith.constant 1.000000e+00 : f32
    %60 = vector.broadcast %cst_32 : f32 to vector<6x4xf32>
    %61 = arith.addf %60, %59 : vector<6x4xf32>
    %62 = arith.divf %60, %61 : vector<6x4xf32>
    %c0_33 = arith.constant 0 : index
    %c0_34 = arith.constant 0 : index
    %63 = vector.load %arg5[%c0_33, %c0_34] : memref<32x32xf32, #tpu.memory_space<vmem>>, vector<32x32xf32>
    %cst_35 = arith.constant dense<0.000000e+00> : vector<6x32xf32>
    %64 = tpu.matmul %56, %63, %cst_35 {dimension_numbers = #tpu.dot_dimension_numbers<[1], [0], [0], [1], [0, 0, 1, 1], [], []>} : vector<6x32xf32>, vector<32x32xf32>, vector<6x32xf32> -> vector<6x32xf32>
    %65 = vector.shape_cast %62 : vector<6x4xf32> to vector<6x1x4xf32>
    %66 = vector.shape_cast %2 : vector<32x4xf32> to vector<1x32x4xf32>
    %67 = vector.shape_cast %64 : vector<6x32xf32> to vector<6x32x1xf32>
    %68 = vector.broadcast %66 : vector<1x32x4xf32> to vector<6x32x4xf32>
    %69 = vector.broadcast %67 : vector<6x32x1xf32> to vector<6x32x4xf32>
    %70 = arith.addf %68, %69 : vector<6x32x4xf32>
    %71 = vector.broadcast %65 : vector<6x1x4xf32> to vector<6x32x4xf32>
    %72 = arith.mulf %71, %70 : vector<6x32x4xf32>
    %73 = vector.shape_cast %3 : vector<32x1xf32> to vector<1x32x1xf32>
    %74 = vector.broadcast %73 : vector<1x32x1xf32> to vector<6x32x4xf32>
    %75 = arith.addf %72, %74 : vector<6x32x4xf32>
    %cst_36 = arith.constant 0.000000e+00 : f32
    %76 = vector.broadcast %cst_36 : f32 to vector<6x32x4xf32>
    %77 = arith.maximumf %75, %76 : vector<6x32x4xf32>
    %cst_37 = arith.constant dense<0.000000e+00> : vector<32x4xf32>
    %78 = vector.multi_reduction <add>, %77, %cst_37 [0] : vector<6x32x4xf32> to vector<32x4xf32>
    %cst_38 = arith.constant 6.000000e+00 : f32
    %79 = vector.broadcast %cst_38 : f32 to vector<32x4xf32>
    %80 = arith.divf %78, %79 : vector<32x4xf32>
    %81 = arith.addf %80, %0 : vector<32x4xf32>
    %82 = arith.mulf %81, %81 : vector<32x4xf32>
    %cst_39 = arith.constant dense<0.000000e+00> : vector<4xf32>
    %83 = vector.multi_reduction <add>, %82, %cst_39 [0] : vector<32x4xf32> to vector<4xf32>
    %84 = vector.shape_cast %83 : vector<4xf32> to vector<1x4xf32>
    %85 = math.sqrt %84 : vector<1x4xf32>
    %cst_40 = arith.constant 9.99999993E-9 : f32
    %86 = vector.broadcast %cst_40 : f32 to vector<1x4xf32>
    %87 = arith.addf %85, %86 : vector<1x4xf32>
    %88 = tpu.reciprocal %87 : vector<1x4xf32> -> vector<1x4xf32>
    %89 = vector.broadcast %88 : vector<1x4xf32> to vector<32x4xf32>
    %90 = arith.mulf %81, %89 : vector<32x4xf32>
    %cst_41 = arith.constant dense<0.000000e+00> : vector<32x4xf32>
    %91 = tpu.matmul %4, %90, %cst_41 {dimension_numbers = #tpu.dot_dimension_numbers<[1], [0], [0], [1], [0, 0, 1, 1], [], []>} : vector<32x32xf32>, vector<32x4xf32>, vector<32x4xf32> -> vector<32x4xf32>
    %92 = vector.broadcast %5 : vector<32x1xf32> to vector<32x4xf32>
    %93 = arith.addf %91, %92 : vector<32x4xf32>
    %cst_42 = arith.constant 0.000000e+00 : f32
    %94 = vector.broadcast %cst_42 : f32 to vector<32x4xf32>
    %95 = arith.maximumf %93, %94 : vector<32x4xf32>
    %cst_43 = arith.constant dense<0.000000e+00> : vector<1x4xf32>
    %96 = tpu.matmul %6, %95, %cst_43 {dimension_numbers = #tpu.dot_dimension_numbers<[1], [0], [0], [1], [0, 0, 1, 1], [], []>} : vector<1x32xf32>, vector<32x4xf32>, vector<1x4xf32> -> vector<1x4xf32>
    %97 = vector.broadcast %7 : vector<1x1xf32> to vector<1x4xf32>
    %98 = arith.addf %96, %97 : vector<1x4xf32>
    %99 = arith.negf %98 : vector<1x4xf32>
    %100 = math.exp %99 : vector<1x4xf32>
    %cst_44 = arith.constant 1.000000e+00 : f32
    %101 = vector.broadcast %cst_44 : f32 to vector<1x4xf32>
    %102 = arith.addf %101, %100 : vector<1x4xf32>
    %103 = arith.divf %101, %102 : vector<1x4xf32>
    %104 = tpu.concatenate %55, %103 in 0 : vector<1x4xf32>, vector<1x4xf32> -> vector<2x4xf32>
    %c0_45 = arith.constant 0 : index
    %c0_46 = arith.constant 0 : index
    %105 = vector.load %arg11[%c0_45, %c0_46] : memref<2x4xf32, #tpu.memory_space<vmem>>, vector<2x4xf32>
    tpu.vector_store %arg11[%c0_45, %c0_46], %104 {strides = array<i32>} : memref<2x4xf32, #tpu.memory_space<vmem>>, vector<2x4xf32>,
    return
  }
  func.func @transform_0(%arg0: i32) -> (i32, i32) {
    %c0_i32 = arith.constant 0 : i32
    %c0_i32_0 = arith.constant 0 : i32
    return %c0_i32, %arg0 : i32, i32
  }
  func.func @transform_1(%arg0: i32) -> (i32, i32) {
    %c0_i32 = arith.constant 0 : i32
    %c0_i32_0 = arith.constant 0 : i32
    %c0_i32_1 = arith.constant 0 : i32
    return %c0_i32, %c0_i32_0 : i32, i32
  }
  func.func @transform_2(%arg0: i32) -> (i32, i32) {
    %c0_i32 = arith.constant 0 : i32
    %c0_i32_0 = arith.constant 0 : i32
    %c0_i32_1 = arith.constant 0 : i32
    return %c0_i32, %c0_i32_0 : i32, i32
  }
  func.func @transform_3(%arg0: i32) -> (i32, i32) {
    %c0_i32 = arith.constant 0 : i32
    %c0_i32_0 = arith.constant 0 : i32
    %c0_i32_1 = arith.constant 0 : i32
    return %c0_i32, %c0_i32_0 : i32, i32
  }
  func.func @transform_4(%arg0: i32) -> (i32, i32) {
    %c0_i32 = arith.constant 0 : i32
    %c0_i32_0 = arith.constant 0 : i32
    %c0_i32_1 = arith.constant 0 : i32
    return %c0_i32, %c0_i32_0 : i32, i32
  }
  func.func @transform_5(%arg0: i32) -> (i32, i32) {
    %c0_i32 = arith.constant 0 : i32
    %c0_i32_0 = arith.constant 0 : i32
    %c0_i32_1 = arith.constant 0 : i32
    return %c0_i32, %c0_i32_0 : i32, i32
  }
  func.func @transform_6(%arg0: i32) -> (i32, i32) {
    %c0_i32 = arith.constant 0 : i32
    %c0_i32_0 = arith.constant 0 : i32
    %c0_i32_1 = arith.constant 0 : i32
    return %c0_i32, %c0_i32_0 : i32, i32
  }
  func.func @transform_7(%arg0: i32) -> (i32, i32) {
    %c0_i32 = arith.constant 0 : i32
    %c0_i32_0 = arith.constant 0 : i32
    %c0_i32_1 = arith.constant 0 : i32
    return %c0_i32, %c0_i32_0 : i32, i32
  }
  func.func @transform_8(%arg0: i32) -> (i32, i32) {
    %c0_i32 = arith.constant 0 : i32
    %c0_i32_0 = arith.constant 0 : i32
    %c0_i32_1 = arith.constant 0 : i32
    return %c0_i32, %c0_i32_0 : i32, i32
  }
  func.func @transform_9(%arg0: i32) -> (i32, i32) {
    %c0_i32 = arith.constant 0 : i32
    %c0_i32_0 = arith.constant 0 : i32
    %c0_i32_1 = arith.constant 0 : i32
    return %c0_i32, %c0_i32_0 : i32, i32
  }
  func.func @transform_10(%arg0: i32) -> (i32, i32) {
    %c0_i32 = arith.constant 0 : i32
    %c0_i32_0 = arith.constant 0 : i32
    return %c0_i32, %arg0 : i32, i32
  }
}

</mosaic_0001>

<llo_original>
// kernel: tpu_custom_call.1
$region0: #{tpu_custom_call.1}
  #allocation0 [shape = 'u32[]', space=smem, size = 0x4, offset = 0x4, fixed_abs, tag = 'smem constant byte address 0x4 - core index']
  #allocation1 [shape = 'u32[72,128]{1,0:T(1,128)}', space=vmem, size = 0x9000, scoped, tag = 'internal scratch']
  #allocation2 [shape = 'f32[1,1]{1,0:T(1,128)S(1)}', space=vmem, size = 0x200, scoped, tag = 'scoped memory for tpu_custom_call.1']
  %s0 = inlined_call_operand.vmem [shape: f32[32,4], index: 0, kind: input, shape index: {}]
  %s1 = inlined_call_operand.hbm [shape: f32[8,32], index: 1, kind: input, shape index: {}]
  %s2 = inlined_call_operand.hbm [shape: f32[6,32], index: 2, kind: input, shape index: {}]
  %s3 = inlined_call_operand.vmem [shape: f32[32,32], index: 3, kind: input, shape index: {}]
  %s4 = inlined_call_operand.vmem [shape: f32[32,32], index: 4, kind: input, shape index: {}]
  %s5 = inlined_call_operand.vmem [shape: f32[32,1], index: 5, kind: input, shape index: {}]
  %s6 = inlined_call_operand.vmem [shape: f32[32,32], index: 6, kind: input, shape index: {}]
  %s7 = inlined_call_operand.vmem [shape: f32[32,1], index: 7, kind: input, shape index: {}]
  %s8 = inlined_call_operand.vmem [shape: f32[1,32], index: 8, kind: input, shape index: {}]
  %s9 = inlined_call_operand.<no memory space> [shape: f32[1,1], index: 9, kind: input, shape index: {}]
  %s10 = inlined_call_operand.hbm [shape: f32[2,4], index: 10, kind: output, shape index: {}]
  %s11 = sld [smem:[#allocation0]]
  $region58: #{tpu_custom_call.1} parent=0
    _
  %s13 = ssub.s32 1, %s11
  %s14 = scalar_select 0, %s13, %s11
  %v15 = vstv %s9
  %16 = vst [vmem:[#allocation2] sm:$0x1] %v15
  $region1: #{tpu_custom_call.1} parent=0
    #allocation3 [shape = 'u8[4096]{0}', space=vmem, size = 0x1000, scoped, tag = 'input window, operand 1, single buffered']
    #allocation4 [shape = 's32[1]{0}', space=sflag, size = 0x4, scoped, tag = 'scoped memory for tpu_custom_call.1']
    #allocation5 [shape = 's32[1]{0}', space=sflag, size = 0x4, scoped, tag = 'scoped memory for tpu_custom_call.1']
    #allocation6 [shape = 'u8[4096]{0}', space=vmem, size = 0x1000, scoped, tag = 'input window, operand 2, single buffered']
    #allocation7 [shape = 's32[1]{0}', space=sflag, size = 0x4, scoped, tag = 'scoped memory for tpu_custom_call.1']
    #allocation8 [shape = 'u8[1024]{0}', space=vmem, size = 0x400, scoped, tag = 'output window, operand 0, single buffered']
    %17 = vsyncpa [#allocation4], 0
    %18 = vsyncpa [#allocation7], 0
    %19 = vsyncpa [#allocation5], 0
    // Predicated region
    $region2: #{tpu_custom_call.1} parent=1 // pred_check
      _
    $region3: #{tpu_custom_call.1} parent=1 // pred_check_branch
      %21 = sbr.rel (0) target = $region5
    $region4: #{tpu_custom_call.1} parent=1 // pred_region
      _
    $region5: #{tpu_custom_call.1} parent=1 // pred_fallthru
      _
    // Predicated region
    $region6: #{tpu_custom_call.1} parent=1 // pred_check
      _
    $region7: #{tpu_custom_call.1} parent=1 // pred_check_branch
      %23 = sbr.rel (0) target = $region9
    $region8: #{tpu_custom_call.1} parent=1 // pred_region
      %25 = vsyncadd [#allocation4], 0
      %s27 = sshll.u32 %s1, 4
      %s28 = int_to_ptr.hbm [resolvable:$true] %s27
      %s29 = sshll.u32 [#allocation3], 4
      %s30 = int_to_ptr.vmem [resolvable:$true] %s29
      %32 = dma.hbm_to_vmem [thread:$0]  %s28, 128, %s30, [#allocation4]
    $region9: #{tpu_custom_call.1} parent=1 // pred_fallthru
      _
    // Predicated region
    $region10: #{tpu_custom_call.1} parent=1 // pred_check
      _
    $region11: #{tpu_custom_call.1} parent=1 // pred_check_branch
      %34 = sbr.rel (0) target = $region13
    $region12: #{tpu_custom_call.1} parent=1 // pred_region
      %36 = vsyncadd [#allocation7], 0
      %s38 = sshll.u32 %s2, 4
      %s39 = int_to_ptr.hbm [resolvable:$true] %s38
      %s40 = sshll.u32 [#allocation6], 4
      %s41 = int_to_ptr.vmem [resolvable:$true] %s40
      %43 = dma.hbm_to_vmem [thread:$0]  %s39, 128, %s41, [#allocation7]
    $region13: #{tpu_custom_call.1} parent=1 // pred_fallthru
      _
    // Predicated region
    $region14: #{tpu_custom_call.1} parent=1 // pred_check
      _
    $region15: #{tpu_custom_call.1} parent=1 // pred_check_branch
      %45 = sbr.rel (0) target = $region17
    $region16: #{tpu_custom_call.1} parent=1 // pred_region
      _
    $region17: #{tpu_custom_call.1} parent=1 // pred_fallthru
      _
    // Predicated region
    $region18: #{tpu_custom_call.1} parent=1 // pred_check
      _
    $region19: #{tpu_custom_call.1} parent=1 // pred_check_branch
      %47 = sbr.rel (0) target = $region21
    $region20: #{tpu_custom_call.1} parent=1 // pred_region
      _
    $region21: #{tpu_custom_call.1} parent=1 // pred_fallthru
      _
    // Predicated region
    $region22: #{tpu_custom_call.1} parent=1 // pred_check
      _
    $region23: #{tpu_custom_call.1} parent=1 // pred_check_branch
      %49 = sbr.rel (0) target = $region25
    $region24: #{tpu_custom_call.1} parent=1 // pred_region
      _
    $region25: #{tpu_custom_call.1} parent=1 // pred_fallthru
      _
    // Predicated region
    $region26: #{tpu_custom_call.1} parent=1 // pred_check
      _
    $region27: #{tpu_custom_call.1} parent=1 // pred_check_branch
      %51 = sbr.rel (0) target = $region29
    $region28: #{tpu_custom_call.1} parent=1 // pred_region
      _
    $region29: #{tpu_custom_call.1} parent=1 // pred_fallthru
      _
    // Predicated region
    $region30: #{tpu_custom_call.1} parent=1 // pred_check
      _
    $region31: #{tpu_custom_call.1} parent=1 // pred_check_branch
      %53 = sbr.rel (0) target = $region33
    $region32: #{tpu_custom_call.1} parent=1 // pred_region
      _
    $region33: #{tpu_custom_call.1} parent=1 // pred_fallthru
      _
    // Predicated region
    $region34: #{tpu_custom_call.1} parent=1 // pred_check
      _
    $region35: #{tpu_custom_call.1} parent=1 // pred_check_branch
      %55 = sbr.rel (0) target = $region37
    $region36: #{tpu_custom_call.1} parent=1 // pred_region
      _
    $region37: #{tpu_custom_call.1} parent=1 // pred_fallthru
      _
    // Predicated region
    $region38: #{tpu_custom_call.1} parent=1 // pred_check
      _
    $region39: #{tpu_custom_call.1} parent=1 // pred_check_branch
      %57 = sbr.rel (0) target = $region41
    $region40: #{tpu_custom_call.1} parent=1 // pred_region
      _
    $region41: #{tpu_custom_call.1} parent=1 // pred_fallthru
      _
    // Predicated region
    $region42: #{tpu_custom_call.1} parent=1 // pred_check
      _
    $region43: #{tpu_custom_call.1} parent=1 // pred_check_branch
      %59 = sbr.rel (0) target = $region45
    $region44: #{tpu_custom_call.1} parent=1 // pred_region
      %61 = dma.done [#allocation4], 128
    $region45: #{tpu_custom_call.1} parent=1 // pred_fallthru
      _
    // Predicated region
    $region46: #{tpu_custom_call.1} parent=1 // pred_check
      _
    $region47: #{tpu_custom_call.1} parent=1 // pred_check_branch
      %63 = sbr.rel (0) target = $region49
    $region48: #{tpu_custom_call.1} parent=1 // pred_region
      %65 = dma.done [#allocation7], 128
    $region49: #{tpu_custom_call.1} parent=1 // pred_fallthru
      _
    %v66 = vld [vmem:[%s0] sm:$0xff]
    %v67 = vld [vmem:[%s0 + $0x8] sm:$0xff]
    %v68 = vld [vmem:[%s0 + $0x10] sm:$0xff]
    %v69 = vld [vmem:[%s0 + $0x18] sm:$0xff]
    %v70 = vld [vmem:[%s3] sm:$0xff]
    %v71 = vld [vmem:[%s3 + $0x8] sm:$0xff]
    %v72 = vld [vmem:[%s3 + $0x10] sm:$0xff]
    %v73 = vld [vmem:[%s3 + $0x18] sm:$0xff]
    %vm74 = vcmask 261120
    %v76 = vsel %vm74, %v70, 0
    %v79 = vsel %vm74, %v71, 0
    %v82 = vsel %vm74, %v72, 0
    %v85 = vsel %vm74, %v73, 0
    %87 = vmatpush.msra.mxu0 0.0
    %88 = vmatpush.msra.mxu0 0.0
    %89 = vmatpush.msra.mxu0 0.0
    %90 = vmatpush.msra.mxu0 0.0
    %91 = vmatpush.msra.mxu0 0.0
    %92 = vmatpush.msra.mxu0 0.0
    %93 = vmatpush.msra.mxu0 0.0
    %94 = vmatpush.msra.mxu0 0.0
    %95 = vmatpush.msra.mxu0 0.0
    %96 = vmatpush.msra.mxu0 0.0
    %97 = vmatpush.msra.mxu0 0.0
    %98 = vmatpush.msra.mxu0 0.0
    %99 = vmatpush.msra.mxu0 %v69
    %100 = vmatpush.msra.mxu0 %v68
    %101 = vmatpush.msra.mxu0 %v67
    %102 = vmatpush.msra.mxu0 %v66
    %103 = vmatmul.f32.gmra.mxu0 %v76
    %v104 = vpop.f32.mrf.mxu0
    %v105 = vadd.f32 0.0, %v104
    %106 = vmatmul.f32.gmra.mxu0 %v79
    %v107 = vpop.f32.mrf.mxu0
    %v108 = vadd.f32 0.0, %v107
    %109 = vmatmul.f32.gmra.mxu0 %v82
    %v110 = vpop.f32.mrf.mxu0
    %v111 = vadd.f32 0.0, %v110
    %112 = vmatmul.f32.gmra.mxu0 %v85
    %v113 = vpop.f32.mrf.mxu0
    %v114 = vadd.f32 0.0, %v113
    %115 = vdwg.mxu0
    %v116 = vld [vmem:[%s5] sm:$0xff]
    %v117 = vld [vmem:[%s5 + $0x8] sm:$0xff]
    %v118 = vld [vmem:[%s5 + $0x10] sm:$0xff]
    %v119 = vld [vmem:[%s5 + $0x18] sm:$0xff]
    %v120 = vld [vmem:[%s6] sm:$0xff]
    %v121 = vld [vmem:[%s6 + $0x8] sm:$0xff]
    %v122 = vld [vmem:[%s6 + $0x10] sm:$0xff]
    %v123 = vld [vmem:[%s6 + $0x18] sm:$0xff]
    %v124 = vld [vmem:[%s7] sm:$0xff]
    %v125 = vld [vmem:[%s7 + $0x8] sm:$0xff]
    %v126 = vld [vmem:[%s7 + $0x10] sm:$0xff]
    %v127 = vld [vmem:[%s7 + $0x18] sm:$0xff]
    %v128 = vld [vmem:[%s8] sm:$0x1]
    %v129 = vld [vmem:[#allocation2] sm:$0x1]
    %v130 = vld [vmem:[#allocation3] sm:$0xff]
    %v132 = vsel %vm74, %v130, 0
    %134 = vmatpush.msra.mxu0 0.0
    %135 = vmatpush.msra.mxu0 0.0
    %136 = vmatpush.msra.mxu0 0.0
    %137 = vmatpush.msra.mxu0 0.0
    %138 = vmatpush.msra.mxu0 0.0
    %139 = vmatpush.msra.mxu0 0.0
    %140 = vmatpush.msra.mxu0 0.0
    %141 = vmatpush.msra.mxu0 0.0
    %142 = vmatpush.msra.mxu0 0.0
    %143 = vmatpush.msra.mxu0 0.0
    %144 = vmatpush.msra.mxu0 0.0
    %145 = vmatpush.msra.mxu0 0.0
    %146 = vmatpush.msra.mxu0 %v69
    %147 = vmatpush.msra.mxu0 %v68
    %148 = vmatpush.msra.mxu0 %v67
    %149 = vmatpush.msra.mxu0 %v66
    %150 = vmatmul.f32.gmra.mxu0 %v132
    %v151 = vpop.f32.mrf.mxu0
    %v152 = vadd.f32 0.0, %v151
    %153 = vdwg.mxu0
    %v154 = vxor.u32 %v152, 2147483648
    %v155 = vmul.f32 %v154, 1.442695
    %v156 = vpow.pop %v155
    %v157 = vadd.f32 %v156, 1.0
    %v158 = vrcp.pop %v157
    %v159 = vmul.f32 %v157, %v158
    %v160 = vsub.f32 1.0, %v159
    %v161 = vmul.f32 %v158, %v160
    %v162 = vadd.f32 %v158, %v161
    %vm163 = vweird.f32 %v157
    %vm164 = vweird.f32 %v158
    %vm165 = vmor %vm163, %vm164
    %v166 = vsel %vm165, %v158, %v162
    %v167 = vand.u32 2147483647, %v157
    %vm168 = vcmp.eq.f32.partialorder %v167, 8.507059e+37
    %v169 = vand.u32 %v157, 2147483648
    %v170 = vor.u32 1.1754944e-38, %v169
    %v171 = vsel %vm168, %v170, %v166
    %v172 = vmul.f32 1.0, %v171
    %v173 = vld [vmem:[%s4] sm:$0xff]
    %v174 = vld [vmem:[%s4 + $0x8] sm:$0xff]
    %v175 = vld [vmem:[%s4 + $0x10] sm:$0xff]
    %v176 = vld [vmem:[%s4 + $0x18] sm:$0xff]
    %177 = vmatpush.msra.mxu0 0.0
    %178 = vmatpush.msra.mxu0 0.0
    %179 = vmatpush.msra.mxu0 0.0
    %180 = vmatpush.msra.mxu0 0.0
    %181 = vmatpush.msra.mxu0 0.0
    %182 = vmatpush.msra.mxu0 0.0
    %183 = vmatpush.msra.mxu0 0.0
    %184 = vmatpush.msra.mxu0 0.0
    %185 = vmatpush.msra.mxu0 0.0
    %186 = vmatpush.msra.mxu0 0.0
    %187 = vmatpush.msra.mxu0 0.0
    %188 = vmatpush.msra.mxu0 0.0
    %189 = vmatpush.msra.mxu0 %v176
    %190 = vmatpush.msra.mxu0 %v175
    %191 = vmatpush.msra.mxu0 %v174
    %192 = vmatpush.msra.mxu0 %v173
    %193 = vmatmul.f32.gmra.mxu0 %v132
    %v194 = vpop.f32.mrf.mxu0
    %v195 = vadd.f32 0.0, %v194
    %196 = vdwg.mxu0
    %v198 = vrot.slane %v172, 1
    %v199 = vrot.slane %v172, 2
    %v200 = vrot.slane %v172, 3
    %v201 = vrot.slane %v172, 4
    %v202 = vrot.slane %v172, 5
    %v203 = vrot.slane %v172, 6
    %v204 = vrot.slane %v172, 7
    %v205 = vperm.slane %v195, 0
    %v206 = vlaneseq
    %v207 = vshrl.u32 %v206, 7
    %209 = vset.pattern.permute.xlu0 %v207
    %210 = vperm.xlu0 %209, %v205
    %v211 = vpop.permute.xlu0 %210
    %v212 = vlaneseq
    %v213 = vshrl.u32 %v212, 7
    %v214 = vadd.s32 %v213, 8
    %215 = vset.pattern.permute.xlu0 %v214
    %216 = vperm.xlu0 %215, %v205
    %v217 = vpop.permute.xlu0 %216
    %v218 = vlaneseq
    %v219 = vshrl.u32 %v218, 7
    %v220 = vadd.s32 %v219, 16
    %221 = vset.pattern.permute.xlu0 %v220
    %222 = vperm.xlu0 %221, %v205
    %v223 = vpop.permute.xlu0 %222
    %v224 = vlaneseq
    %v225 = vshrl.u32 %v224, 7
    %v226 = vadd.s32 %v225, 24
    %227 = vset.pattern.permute.xlu0 %v226
    %228 = vperm.xlu0 %227, %v205
    %v229 = vpop.permute.xlu0 %228
    %v230 = vperm.slane %v195, 1
    %v231 = vlaneseq
    %v232 = vshrl.u32 %v231, 7
    %234 = vset.pattern.permute.xlu0 %v232
    %235 = vperm.xlu0 %234, %v230
    %v236 = vpop.permute.xlu0 %235
    %v237 = vlaneseq
    %v238 = vshrl.u32 %v237, 7
    %v239 = vadd.s32 %v238, 8
    %240 = vset.pattern.permute.xlu0 %v239
    %241 = vperm.xlu0 %240, %v230
    %v242 = vpop.permute.xlu0 %241
    %v243 = vlaneseq
    %v244 = vshrl.u32 %v243, 7
    %v245 = vadd.s32 %v244, 16
    %246 = vset.pattern.permute.xlu0 %v245
    %247 = vperm.xlu0 %246, %v230
    %v248 = vpop.permute.xlu0 %247
    %v249 = vlaneseq
    %v250 = vshrl.u32 %v249, 7
    %v251 = vadd.s32 %v250, 24
    %252 = vset.pattern.permute.xlu0 %v251
    %253 = vperm.xlu0 %252, %v230
    %v254 = vpop.permute.xlu0 %253
    %v255 = vperm.slane %v195, 2
    %v256 = vlaneseq
    %v257 = vshrl.u32 %v256, 7
    %259 = vset.pattern.permute.xlu0 %v257
    %260 = vperm.xlu0 %259, %v255
    %v261 = vpop.permute.xlu0 %260
    %v262 = vlaneseq
    %v263 = vshrl.u32 %v262, 7
    %v264 = vadd.s32 %v263, 8
    %265 = vset.pattern.permute.xlu0 %v264
    %266 = vperm.xlu0 %265, %v255
    %v267 = vpop.permute.xlu0 %266
    %v268 = vlaneseq
    %v269 = vshrl.u32 %v268, 7
    %v270 = vadd.s32 %v269, 16
    %271 = vset.pattern.permute.xlu0 %v270
    %272 = vperm.xlu0 %271, %v255
    %v273 = vpop.permute.xlu0 %272
    %v274 = vlaneseq
    %v275 = vshrl.u32 %v274, 7
    %v276 = vadd.s32 %v275, 24
    %277 = vset.pattern.permute.xlu0 %v276
    %278 = vperm.xlu0 %277, %v255
    %v279 = vpop.permute.xlu0 %278
    %v280 = vperm.slane %v195, 3
    %v281 = vlaneseq
    %v282 = vshrl.u32 %v281, 7
    %284 = vset.pattern.permute.xlu0 %v282
    %285 = vperm.xlu0 %284, %v280
    %v286 = vpop.permute.xlu0 %285
    %v287 = vlaneseq
    %v288 = vshrl.u32 %v287, 7
    %v289 = vadd.s32 %v288, 8
    %290 = vset.pattern.permute.xlu0 %v289
    %291 = vperm.xlu0 %290, %v280
    %v292 = vpop.permute.xlu0 %291
    %v293 = vlaneseq
    %v294 = vshrl.u32 %v293, 7
    %v295 = vadd.s32 %v294, 16
    %296 = vset.pattern.permute.xlu0 %v295
    %297 = vperm.xlu0 %296, %v280
    %v298 = vpop.permute.xlu0 %297
    %v299 = vlaneseq
    %v300 = vshrl.u32 %v299, 7
    %v301 = vadd.s32 %v300, 24
    %302 = vset.pattern.permute.xlu0 %v301
    %303 = vperm.xlu0 %302, %v280
    %v304 = vpop.permute.xlu0 %303
    %v305 = vperm.slane %v195, 4
    %v306 = vlaneseq
    %v307 = vshrl.u32 %v306, 7
    %309 = vset.pattern.permute.xlu0 %v307
    %310 = vperm.xlu0 %309, %v305
    %v311 = vpop.permute.xlu0 %310
    %v312 = vlaneseq
    %v313 = vshrl.u32 %v312, 7
    %v314 = vadd.s32 %v313, 8
    %315 = vset.pattern.permute.xlu0 %v314
    %316 = vperm.xlu0 %315, %v305
    %v317 = vpop.permute.xlu0 %316
    %v318 = vlaneseq
    %v319 = vshrl.u32 %v318, 7
    %v320 = vadd.s32 %v319, 16
    %321 = vset.pattern.permute.xlu0 %v320
    %322 = vperm.xlu0 %321, %v305
    %v323 = vpop.permute.xlu0 %322
    %v324 = vlaneseq
    %v325 = vshrl.u32 %v324, 7
    %v326 = vadd.s32 %v325, 24
    %327 = vset.pattern.permute.xlu0 %v326
    %328 = vperm.xlu0 %327, %v305
    %v329 = vpop.permute.xlu0 %328
    %v330 = vperm.slane %v195, 5
    %v331 = vlaneseq
    %v332 = vshrl.u32 %v331, 7
    %334 = vset.pattern.permute.xlu0 %v332
    %335 = vperm.xlu0 %334, %v330
    %v336 = vpop.permute.xlu0 %335
    %v337 = vlaneseq
    %v338 = vshrl.u32 %v337, 7
    %v339 = vadd.s32 %v338, 8
    %340 = vset.pattern.permute.xlu0 %v339
    %341 = vperm.xlu0 %340, %v330
    %v342 = vpop.permute.xlu0 %341
    %v343 = vlaneseq
    %v344 = vshrl.u32 %v343, 7
    %v345 = vadd.s32 %v344, 16
    %346 = vset.pattern.permute.xlu0 %v345
    %347 = vperm.xlu0 %346, %v330
    %v348 = vpop.permute.xlu0 %347
    %v349 = vlaneseq
    %v350 = vshrl.u32 %v349, 7
    %v351 = vadd.s32 %v350, 24
    %352 = vset.pattern.permute.xlu0 %v351
    %353 = vperm.xlu0 %352, %v330
    %v354 = vpop.permute.xlu0 %353
    %v355 = vperm.slane %v195, 6
    %v356 = vlaneseq
    %v357 = vshrl.u32 %v356, 7
    %359 = vset.pattern.permute.xlu0 %v357
    %360 = vperm.xlu0 %359, %v355
    %v361 = vpop.permute.xlu0 %360
    %v362 = vlaneseq
    %v363 = vshrl.u32 %v362, 7
    %v364 = vadd.s32 %v363, 8
    %365 = vset.pattern.permute.xlu0 %v364
    %366 = vperm.xlu0 %365, %v355
    %v367 = vpop.permute.xlu0 %366
    %v368 = vlaneseq
    %v369 = vshrl.u32 %v368, 7
    %v370 = vadd.s32 %v369, 16
    %371 = vset.pattern.permute.xlu0 %v370
    %372 = vperm.xlu0 %371, %v355
    %v373 = vpop.permute.xlu0 %372
    %v374 = vlaneseq
    %v375 = vshrl.u32 %v374, 7
    %v376 = vadd.s32 %v375, 24
    %377 = vset.pattern.permute.xlu0 %v376
    %378 = vperm.xlu0 %377, %v355
    %v379 = vpop.permute.xlu0 %378
    %v380 = vperm.slane %v195, 7
    %v381 = vlaneseq
    %v382 = vshrl.u32 %v381, 7
    %384 = vset.pattern.permute.xlu0 %v382
    %385 = vperm.xlu0 %384, %v380
    %v386 = vpop.permute.xlu0 %385
    %v387 = vlaneseq
    %v388 = vshrl.u32 %v387, 7
    %v389 = vadd.s32 %v388, 8
    %390 = vset.pattern.permute.xlu0 %v389
    %391 = vperm.xlu0 %390, %v380
    %v392 = vpop.permute.xlu0 %391
    %v393 = vlaneseq
    %v394 = vshrl.u32 %v393, 7
    %v395 = vadd.s32 %v394, 16
    %396 = vset.pattern.permute.xlu0 %v395
    %397 = vperm.xlu0 %396, %v380
    %v398 = vpop.permute.xlu0 %397
    %v399 = vlaneseq
    %v400 = vshrl.u32 %v399, 7
    %v401 = vadd.s32 %v400, 24
    %402 = vset.pattern.permute.xlu0 %v401
    %403 = vperm.xlu0 %402, %v380
    %v404 = vpop.permute.xlu0 %403
    %v405 = vadd.f32 %v105, %v211
    %v406 = vadd.f32 %v108, %v217
    %v407 = vadd.f32 %v111, %v223
    %v408 = vadd.f32 %v114, %v229
    %v409 = vadd.f32 %v105, %v236
    %v410 = vadd.f32 %v108, %v242
    %v411 = vadd.f32 %v111, %v248
    %v412 = vadd.f32 %v114, %v254
    %v413 = vadd.f32 %v105, %v261
    %v414 = vadd.f32 %v108, %v267
    %v415 = vadd.f32 %v111, %v273
    %v416 = vadd.f32 %v114, %v279
    %v417 = vadd.f32 %v105, %v286
    %v418 = vadd.f32 %v108, %v292
    %v419 = vadd.f32 %v111, %v298
    %v420 = vadd.f32 %v114, %v304
    %v421 = vadd.f32 %v105, %v311
    %v422 = vadd.f32 %v108, %v317
    %v423 = vadd.f32 %v111, %v323
    %v424 = vadd.f32 %v114, %v329
    %v425 = vadd.f32 %v105, %v336
    %v426 = vadd.f32 %v108, %v342
    %v427 = vadd.f32 %v111, %v348
    %v428 = vadd.f32 %v114, %v354
    %v429 = vadd.f32 %v105, %v361
    %v430 = vadd.f32 %v108, %v367
    %v431 = vadd.f32 %v111, %v373
    %v432 = vadd.f32 %v114, %v379
    %v433 = vadd.f32 %v105, %v386
    %v434 = vadd.f32 %v108, %v392
    %v435 = vadd.f32 %v111, %v398
    %v436 = vadd.f32 %v114, %v404
    %v437 = vperm.slane %v172, 0
    %v438 = vperm.slane %v198, 0
    %v439 = vperm.slane %v199, 0
    %v440 = vperm.slane %v200, 0
    %v441 = vperm.slane %v201, 0
    %v442 = vperm.slane %v202, 0
    %v443 = vperm.slane %v203, 0
    %v444 = vperm.slane %v204, 0
    %v453 = vmul.f32 %v437, %v405
    %v454 = vmul.f32 %v437, %v406
    %v455 = vmul.f32 %v437, %v407
    %v456 = vmul.f32 %v437, %v408
    %v457 = vmul.f32 %v438, %v409
    %v458 = vmul.f32 %v438, %v410
    %v459 = vmul.f32 %v438, %v411
    %v460 = vmul.f32 %v438, %v412
    %v461 = vmul.f32 %v439, %v413
    %v462 = vmul.f32 %v439, %v414
    %v463 = vmul.f32 %v439, %v415
    %v464 = vmul.f32 %v439, %v416
    %v465 = vmul.f32 %v440, %v417
    %v466 = vmul.f32 %v440, %v418
    %v467 = vmul.f32 %v440, %v419
    %v468 = vmul.f32 %v440, %v420
    %v469 = vmul.f32 %v441, %v421
    %v470 = vmul.f32 %v441, %v422
    %v471 = vmul.f32 %v441, %v423
    %v472 = vmul.f32 %v441, %v424
    %v473 = vmul.f32 %v442, %v425
    %v474 = vmul.f32 %v442, %v426
    %v475 = vmul.f32 %v442, %v427
    %v476 = vmul.f32 %v442, %v428
    %v477 = vmul.f32 %v443, %v429
    %v478 = vmul.f32 %v443, %v430
    %v479 = vmul.f32 %v443, %v431
    %v480 = vmul.f32 %v443, %v432
    %v481 = vmul.f32 %v444, %v433
    %v482 = vmul.f32 %v444, %v434
    %v483 = vmul.f32 %v444, %v435
    %v484 = vmul.f32 %v444, %v436
    %486 = vset.pattern.permute.xlu0 0
    %487 = vperm.xlu0 %486, %v116
    %v488 = vpop.permute.xlu0 %487
    %491 = vset.pattern.permute.xlu0 0
    %492 = vperm.xlu0 %491, %v117
    %v493 = vpop.permute.xlu0 %492
    %496 = vset.pattern.permute.xlu0 0
    %497 = vperm.xlu0 %496, %v118
    %v498 = vpop.permute.xlu0 %497
    %501 = vset.pattern.permute.xlu0 0
    %502 = vperm.xlu0 %501, %v119
    %v503 = vpop.permute.xlu0 %502
    %v505 = vadd.f32 %v453, %v488
    %v506 = vadd.f32 %v454, %v493
    %v507 = vadd.f32 %v455, %v498
    %v508 = vadd.f32 %v456, %v503
    %v509 = vadd.f32 %v457, %v488
    %v510 = vadd.f32 %v458, %v493
    %v511 = vadd.f32 %v459, %v498
    %v512 = vadd.f32 %v460, %v503
    %v513 = vadd.f32 %v461, %v488
    %v514 = vadd.f32 %v462, %v493
    %v515 = vadd.f32 %v463, %v498
    %v516 = vadd.f32 %v464, %v503
    %v517 = vadd.f32 %v465, %v488
    %v518 = vadd.f32 %v466, %v493
    %v519 = vadd.f32 %v467, %v498
    %v520 = vadd.f32 %v468, %v503
    %v521 = vadd.f32 %v469, %v488
    %v522 = vadd.f32 %v470, %v493
    %v523 = vadd.f32 %v471, %v498
    %v524 = vadd.f32 %v472, %v503
    %v525 = vadd.f32 %v473, %v488
    %v526 = vadd.f32 %v474, %v493
    %v527 = vadd.f32 %v475, %v498
    %v528 = vadd.f32 %v476, %v503
    %v529 = vadd.f32 %v477, %v488
    %v530 = vadd.f32 %v478, %v493
    %v531 = vadd.f32 %v479, %v498
    %v532 = vadd.f32 %v480, %v503
    %v533 = vadd.f32 %v481, %v488
    %v534 = vadd.f32 %v482, %v493
    %v535 = vadd.f32 %v483, %v498
    %v536 = vadd.f32 %v484, %v503
    %v537 = vmax.f32 %v505, 0.0
    %v538 = vmax.f32 %v506, 0.0
    %v539 = vmax.f32 %v507, 0.0
    %v540 = vmax.f32 %v508, 0.0
    %v541 = vmax.f32 %v509, 0.0
    %v542 = vmax.f32 %v510, 0.0
    %v543 = vmax.f32 %v511, 0.0
    %v544 = vmax.f32 %v512, 0.0
    %v545 = vmax.f32 %v513, 0.0
    %v546 = vmax.f32 %v514, 0.0
    %v547 = vmax.f32 %v515, 0.0
    %v548 = vmax.f32 %v516, 0.0
    %v549 = vmax.f32 %v517, 0.0
    %v550 = vmax.f32 %v518, 0.0
    %v551 = vmax.f32 %v519, 0.0
    %v552 = vmax.f32 %v520, 0.0
    %v553 = vmax.f32 %v521, 0.0
    %v554 = vmax.f32 %v522, 0.0
    %v555 = vmax.f32 %v523, 0.0
    %v556 = vmax.f32 %v524, 0.0
    %v557 = vmax.f32 %v525, 0.0
    %v558 = vmax.f32 %v526, 0.0
    %v559 = vmax.f32 %v527, 0.0
    %v560 = vmax.f32 %v528, 0.0
    %v561 = vmax.f32 %v529, 0.0
    %v562 = vmax.f32 %v530, 0.0
    %v563 = vmax.f32 %v531, 0.0
    %v564 = vmax.f32 %v532, 0.0
    %v565 = vmax.f32 %v533, 0.0
    %v566 = vmax.f32 %v534, 0.0
    %v567 = vmax.f32 %v535, 0.0
    %v568 = vmax.f32 %v536, 0.0
    %vm569 = vcmask 31744
    %v570 = vsel %vm569, %v537, 0.0
    %v571 = vsel %vm569, %v541, 0.0
    %v572 = vadd.f32 %v570, %v571
    %v573 = vsel %vm569, %v545, 0.0
    %v574 = vadd.f32 %v572, %v573
    %v575 = vsel %vm569, %v549, 0.0
    %v576 = vadd.f32 %v574, %v575
    %v577 = vsel %vm569, %v553, 0.0
    %v578 = vadd.f32 %v576, %v577
    %v579 = vsel %vm569, %v557, 0.0
    %v580 = vadd.f32 %v578, %v579
    %v581 = vsel %vm569, %v561, 0.0
    %v582 = vadd.f32 %v580, %v581
    %v583 = vsel %vm569, %v565, 0.0
    %v584 = vadd.f32 %v582, %v583
    %v585 = vsel %vm569, %v538, 0.0
    %v586 = vsel %vm569, %v542, 0.0
    %v587 = vadd.f32 %v585, %v586
    %v588 = vsel %vm569, %v546, 0.0
    %v589 = vadd.f32 %v587, %v588
    %v590 = vsel %vm569, %v550, 0.0
    %v591 = vadd.f32 %v589, %v590
    %v592 = vsel %vm569, %v554, 0.0
    %v593 = vadd.f32 %v591, %v592
    %v594 = vsel %vm569, %v558, 0.0
    %v595 = vadd.f32 %v593, %v594
    %v596 = vsel %vm569, %v562, 0.0
    %v597 = vadd.f32 %v595, %v596
    %v598 = vsel %vm569, %v566, 0.0
    %v599 = vadd.f32 %v597, %v598
    %v600 = vsel %vm569, %v539, 0.0
    %v601 = vsel %vm569, %v543, 0.0
    %v602 = vadd.f32 %v600, %v601
    %v603 = vsel %vm569, %v547, 0.0
    %v604 = vadd.f32 %v602, %v603
    %v605 = vsel %vm569, %v551, 0.0
    %v606 = vadd.f32 %v604, %v605
    %v607 = vsel %vm569, %v555, 0.0
    %v608 = vadd.f32 %v606, %v607
    %v609 = vsel %vm569, %v559, 0.0
    %v610 = vadd.f32 %v608, %v609
    %v611 = vsel %vm569, %v563, 0.0
    %v612 = vadd.f32 %v610, %v611
    %v613 = vsel %vm569, %v567, 0.0
    %v614 = vadd.f32 %v612, %v613
    %v615 = vsel %vm569, %v540, 0.0
    %v616 = vsel %vm569, %v544, 0.0
    %v617 = vadd.f32 %v615, %v616
    %v618 = vsel %vm569, %v548, 0.0
    %v619 = vadd.f32 %v617, %v618
    %v620 = vsel %vm569, %v552, 0.0
    %v621 = vadd.f32 %v619, %v620
    %v622 = vsel %vm569, %v556, 0.0
    %v623 = vadd.f32 %v621, %v622
    %v624 = vsel %vm569, %v560, 0.0
    %v625 = vadd.f32 %v623, %v624
    %v626 = vsel %vm569, %v564, 0.0
    %v627 = vadd.f32 %v625, %v626
    %v628 = vsel %vm569, %v568, 0.0
    %v629 = vadd.f32 %v627, %v628
    %v630 = vrcp.pop 8.0
    %v631 = vmul.f32 8.0, %v630
    %v632 = vsub.f32 1.0, %v631
    %v633 = vmul.f32 %v630, %v632
    %v634 = vadd.f32 %v630, %v633
    %vm635 = vweird.f32 %v630
    %v636 = vsel %vm635, %v630, %v634
    %v637 = vmul.f32 %v584, %v636
    %v638 = vmul.f32 %v599, %v636
    %v639 = vmul.f32 %v614, %v636
    %v640 = vmul.f32 %v629, %v636
    %v641 = vadd.f32 %v637, %v66
    %v642 = vadd.f32 %v638, %v67
    %v643 = vadd.f32 %v639, %v68
    %v644 = vadd.f32 %v640, %v69
    %v645 = vmul.f32 %v641, %v641
    %v646 = vmul.f32 %v642, %v642
    %v647 = vmul.f32 %v643, %v643
    %v648 = vmul.f32 %v644, %v644
    %v649 = vsel %vm569, %v645, 0.0
    %v650 = vsel %vm569, %v646, 0.0
    %v651 = vadd.f32 %v649, %v650
    %v652 = vsel %vm569, %v647, 0.0
    %v653 = vadd.f32 %v651, %v652
    %v654 = vsel %vm569, %v648, 0.0
    %v655 = vadd.f32 %v653, %v654
    %v656 = vrot.slane %v655, 4
    %v657 = vadd.f32 %v655, %v656
    %v658 = vrot.slane %v657, 2
    %v659 = vadd.f32 %v657, %v658
    %v660 = vrot.slane %v659, 1
    %v661 = vadd.f32 %v659, %v660
    %v662 = vrsqrt.pop %v661
    %v663 = vmul.f32 %v662, %v661
    %v664 = vmul.f32 %v663, %v662
    %v665 = vmul.f32 0.5, %v664
    %v666 = vsub.f32 1.5, %v665
    %v667 = vmul.f32 %v662, %v666
    %v668 = vmul.f32 %v661, %v667
    %vm669 = vcmp.eq.f32.partialorder %v661, inf
    %v670 = vsel %vm669, %v661, %v668
    %vm671 = vcmp.eq.f32.partialorder %v661, 0.0
    %v672 = vand.u32 %v661, 2147483648
    %v673 = vsel %vm671, %v672, %v670
    %v674 = vadd.f32 %v673, 1e-08
    %v675 = vrcp.pop %v674
    %v676 = vmul.f32 %v674, %v675
    %v677 = vsub.f32 1.0, %v676
    %v678 = vmul.f32 %v675, %v677
    %v679 = vadd.f32 %v675, %v678
    %vm680 = vweird.f32 %v674
    %vm681 = vweird.f32 %v675
    %vm682 = vmor %vm680, %vm681
    %v683 = vsel %vm682, %v675, %v679
    %v684 = vand.u32 2147483647, %v674
    %vm685 = vcmp.eq.f32.partialorder %v684, 8.507059e+37
    %v686 = vand.u32 %v674, 2147483648
    %v687 = vor.u32 1.1754944e-38, %v686
    %v688 = vsel %vm685, %v687, %v683
    %v689 = vmul.f32 %v641, %v688
    %v690 = vmul.f32 %v642, %v688
    %v691 = vmul.f32 %v643, %v688
    %v692 = vmul.f32 %v644, %v688
    %694 = vset.pattern.permute.xlu0 0
    %695 = vperm.xlu0 %694, %v124
    %v696 = vpop.permute.xlu0 %695
    %699 = vset.pattern.permute.xlu0 0
    %700 = vperm.xlu0 %699, %v125
    %v701 = vpop.permute.xlu0 %700
    %704 = vset.pattern.permute.xlu0 0
    %705 = vperm.xlu0 %704, %v126
    %v706 = vpop.permute.xlu0 %705
    %709 = vset.pattern.permute.xlu0 0
    %710 = vperm.xlu0 %709, %v127
    %v711 = vpop.permute.xlu0 %710
    %v714 = vsel %vm74, %v120, 0
    %v717 = vsel %vm74, %v121, 0
    %v720 = vsel %vm74, %v122, 0
    %v723 = vsel %vm74, %v123, 0
    %725 = vmatpush.msra.mxu0 0.0
    %726 = vmatpush.msra.mxu0 0.0
    %727 = vmatpush.msra.mxu0 0.0
    %728 = vmatpush.msra.mxu0 0.0
    %729 = vmatpush.msra.mxu0 0.0
    %730 = vmatpush.msra.mxu0 0.0
    %731 = vmatpush.msra.mxu0 0.0
    %732 = vmatpush.msra.mxu0 0.0
    %733 = vmatpush.msra.mxu0 0.0
    %734 = vmatpush.msra.mxu0 0.0
    %735 = vmatpush.msra.mxu0 0.0
    %736 = vmatpush.msra.mxu0 0.0
    %737 = vmatpush.msra.mxu0 %v692
    %738 = vmatpush.msra.mxu0 %v691
    %739 = vmatpush.msra.mxu0 %v690
    %740 = vmatpush.msra.mxu0 %v689
    %741 = vmatmul.f32.gmra.mxu0 %v714
    %v742 = vpop.f32.mrf.mxu0
    %v743 = vadd.f32 %v696, %v742
    %744 = vmatmul.f32.gmra.mxu0 %v717
    %v745 = vpop.f32.mrf.mxu0
    %v746 = vadd.f32 %v701, %v745
    %747 = vmatmul.f32.gmra.mxu0 %v720
    %v748 = vpop.f32.mrf.mxu0
    %v749 = vadd.f32 %v706, %v748
    %750 = vmatmul.f32.gmra.mxu0 %v723
    %v751 = vpop.f32.mrf.mxu0
    %v752 = vadd.f32 %v711, %v751
    %753 = vdwg.mxu0
    %v754 = vmax.f32 %v743, 0.0
    %v755 = vmax.f32 %v746, 0.0
    %v756 = vmax.f32 %v749, 0.0
    %v757 = vmax.f32 %v752, 0.0
    %759 = vset.pattern.permute.xlu0 0
    %760 = vperm.xlu0 %759, %v129
    %v761 = vpop.permute.xlu0 %760
    %v763 = vperm.slane %v761, 0
    %v765 = vsel %vm74, %v128, 0
    %767 = vmatpush.msra.mxu0 0.0
    %768 = vmatpush.msra.mxu0 0.0
    %769 = vmatpush.msra.mxu0 0.0
    %770 = vmatpush.msra.mxu0 0.0
    %771 = vmatpush.msra.mxu0 0.0
    %772 = vmatpush.msra.mxu0 0.0
    %773 = vmatpush.msra.mxu0 0.0
    %774 = vmatpush.msra.mxu0 0.0
    %775 = vmatpush.msra.mxu0 0.0
    %776 = vmatpush.msra.mxu0 0.0
    %777 = vmatpush.msra.mxu0 0.0
    %778 = vmatpush.msra.mxu0 0.0
    %779 = vmatpush.msra.mxu0 %v757
    %780 = vmatpush.msra.mxu0 %v756
    %781 = vmatpush.msra.mxu0 %v755
    %782 = vmatpush.msra.mxu0 %v754
    %783 = vmatmul.f32.gmra.mxu0 %v765
    %v784 = vpop.f32.mrf.mxu0
    %v785 = vadd.f32 %v763, %v784
    %786 = vdwg.mxu0
    %v787 = vxor.u32 %v785, 2147483648
    %v788 = vmul.f32 %v787, 1.442695
    %v789 = vpow.pop %v788
    %v790 = vadd.f32 %v789, 1.0
    %v791 = vrcp.pop %v790
    %v792 = vmul.f32 %v790, %v791
    %v793 = vsub.f32 1.0, %v792
    %v794 = vmul.f32 %v791, %v793
    %v795 = vadd.f32 %v791, %v794
    %vm796 = vweird.f32 %v790
    %vm797 = vweird.f32 %v791
    %vm798 = vmor %vm796, %vm797
    %v799 = vsel %vm798, %v791, %v795
    %v800 = vand.u32 2147483647, %v790
    %vm801 = vcmp.eq.f32.partialorder %v800, 8.507059e+37
    %v802 = vand.u32 %v790, 2147483648
    %v803 = vor.u32 1.1754944e-38, %v802
    %v804 = vsel %vm801, %v803, %v799
    %v805 = vmul.f32 1.0, %v804
    %v806 = vld [vmem:[#allocation6] sm:$0x3f]
    %v808 = vsel %vm74, %v806, 0
    %810 = vmatpush.msra.mxu0 0.0
    %811 = vmatpush.msra.mxu0 0.0
    %812 = vmatpush.msra.mxu0 0.0
    %813 = vmatpush.msra.mxu0 0.0
    %814 = vmatpush.msra.mxu0 0.0
    %815 = vmatpush.msra.mxu0 0.0
    %816 = vmatpush.msra.mxu0 0.0
    %817 = vmatpush.msra.mxu0 0.0
    %818 = vmatpush.msra.mxu0 0.0
    %819 = vmatpush.msra.mxu0 0.0
    %820 = vmatpush.msra.mxu0 0.0
    %821 = vmatpush.msra.mxu0 0.0
    %822 = vmatpush.msra.mxu0 %v69
    %823 = vmatpush.msra.mxu0 %v68
    %824 = vmatpush.msra.mxu0 %v67
    %825 = vmatpush.msra.mxu0 %v66
    %826 = vmatmul.f32.gmra.mxu0 %v808
    %v827 = vpop.f32.mrf.mxu0
    %v828 = vadd.f32 0.0, %v827
    %829 = vdwg.mxu0
    %v830 = vxor.u32 %v828, 2147483648
    %v831 = vmul.f32 %v830, 1.442695
    %v832 = vpow.pop %v831
    %v833 = vadd.f32 %v832, 1.0
    %v834 = vrcp.pop %v833
    %v835 = vmul.f32 %v833, %v834
    %v836 = vsub.f32 1.0, %v835
    %v837 = vmul.f32 %v834, %v836
    %v838 = vadd.f32 %v834, %v837
    %vm839 = vweird.f32 %v833
    %vm840 = vweird.f32 %v834
    %vm841 = vmor %vm839, %vm840
    %v842 = vsel %vm841, %v834, %v838
    %v843 = vand.u32 2147483647, %v833
    %vm844 = vcmp.eq.f32.partialorder %v843, 8.507059e+37
    %v845 = vand.u32 %v833, 2147483648
    %v846 = vor.u32 1.1754944e-38, %v845
    %v847 = vsel %vm844, %v846, %v842
    %v848 = vmul.f32 1.0, %v847
    %849 = vmatpush.msra.mxu0 0.0
    %850 = vmatpush.msra.mxu0 0.0
    %851 = vmatpush.msra.mxu0 0.0
    %852 = vmatpush.msra.mxu0 0.0
    %853 = vmatpush.msra.mxu0 0.0
    %854 = vmatpush.msra.mxu0 0.0
    %855 = vmatpush.msra.mxu0 0.0
    %856 = vmatpush.msra.mxu0 0.0
    %857 = vmatpush.msra.mxu0 0.0
    %858 = vmatpush.msra.mxu0 0.0
    %859 = vmatpush.msra.mxu0 0.0
    %860 = vmatpush.msra.mxu0 0.0
    %861 = vmatpush.msra.mxu0 %v176
    %862 = vmatpush.msra.mxu0 %v175
    %863 = vmatpush.msra.mxu0 %v174
    %864 = vmatpush.msra.mxu0 %v173
    %865 = vmatmul.f32.gmra.mxu0 %v808
    %v866 = vpop.f32.mrf.mxu0
    %v867 = vadd.f32 0.0, %v866
    %868 = vdwg.mxu0
    %v870 = vrot.slane %v848, 1
    %v871 = vrot.slane %v848, 2
    %v872 = vrot.slane %v848, 3
    %v873 = vrot.slane %v848, 4
    %v874 = vrot.slane %v848, 5
    %v875 = vperm.slane %v867, 0
    %v876 = vlaneseq
    %v877 = vshrl.u32 %v876, 7
    %879 = vset.pattern.permute.xlu0 %v877
    %880 = vperm.xlu0 %879, %v875
    %v881 = vpop.permute.xlu0 %880
    %v882 = vlaneseq
    %v883 = vshrl.u32 %v882, 7
    %v884 = vadd.s32 %v883, 8
    %885 = vset.pattern.permute.xlu0 %v884
    %886 = vperm.xlu0 %885, %v875
    %v887 = vpop.permute.xlu0 %886
    %v888 = vlaneseq
    %v889 = vshrl.u32 %v888, 7
    %v890 = vadd.s32 %v889, 16
    %891 = vset.pattern.permute.xlu0 %v890
    %892 = vperm.xlu0 %891, %v875
    %v893 = vpop.permute.xlu0 %892
    %v894 = vlaneseq
    %v895 = vshrl.u32 %v894, 7
    %v896 = vadd.s32 %v895, 24
    %897 = vset.pattern.permute.xlu0 %v896
    %898 = vperm.xlu0 %897, %v875
    %v899 = vpop.permute.xlu0 %898
    %v900 = vperm.slane %v867, 1
    %v901 = vlaneseq
    %v902 = vshrl.u32 %v901, 7
    %904 = vset.pattern.permute.xlu0 %v902
    %905 = vperm.xlu0 %904, %v900
    %v906 = vpop.permute.xlu0 %905
    %v907 = vlaneseq
    %v908 = vshrl.u32 %v907, 7
    %v909 = vadd.s32 %v908, 8
    %910 = vset.pattern.permute.xlu0 %v909
    %911 = vperm.xlu0 %910, %v900
    %v912 = vpop.permute.xlu0 %911
    %v913 = vlaneseq
    %v914 = vshrl.u32 %v913, 7
    %v915 = vadd.s32 %v914, 16
    %916 = vset.pattern.permute.xlu0 %v915
    %917 = vperm.xlu0 %916, %v900
    %v918 = vpop.permute.xlu0 %917
    %v919 = vlaneseq
    %v920 = vshrl.u32 %v919, 7
    %v921 = vadd.s32 %v920, 24
    %922 = vset.pattern.permute.xlu0 %v921
    %923 = vperm.xlu0 %922, %v900
    %v924 = vpop.permute.xlu0 %923
    %v925 = vperm.slane %v867, 2
    %v926 = vlaneseq
    %v927 = vshrl.u32 %v926, 7
    %929 = vset.pattern.permute.xlu0 %v927
    %930 = vperm.xlu0 %929, %v925
    %v931 = vpop.permute.xlu0 %930
    %v932 = vlaneseq
    %v933 = vshrl.u32 %v932, 7
    %v934 = vadd.s32 %v933, 8
    %935 = vset.pattern.permute.xlu0 %v934
    %936 = vperm.xlu0 %935, %v925
    %v937 = vpop.permute.xlu0 %936
    %v938 = vlaneseq
    %v939 = vshrl.u32 %v938, 7
    %v940 = vadd.s32 %v939, 16
    %941 = vset.pattern.permute.xlu0 %v940
    %942 = vperm.xlu0 %941, %v925
    %v943 = vpop.permute.xlu0 %942
    %v944 = vlaneseq
    %v945 = vshrl.u32 %v944, 7
    %v946 = vadd.s32 %v945, 24
    %947 = vset.pattern.permute.xlu0 %v946
    %948 = vperm.xlu0 %947, %v925
    %v949 = vpop.permute.xlu0 %948
    %v950 = vperm.slane %v867, 3
    %v951 = vlaneseq
    %v952 = vshrl.u32 %v951, 7
    %954 = vset.pattern.permute.xlu0 %v952
    %955 = vperm.xlu0 %954, %v950
    %v956 = vpop.permute.xlu0 %955
    %v957 = vlaneseq
    %v958 = vshrl.u32 %v957, 7
    %v959 = vadd.s32 %v958, 8
    %960 = vset.pattern.permute.xlu0 %v959
    %961 = vperm.xlu0 %960, %v950
    %v962 = vpop.permute.xlu0 %961
    %v963 = vlaneseq
    %v964 = vshrl.u32 %v963, 7
    %v965 = vadd.s32 %v964, 16
    %966 = vset.pattern.permute.xlu0 %v965
    %967 = vperm.xlu0 %966, %v950
    %v968 = vpop.permute.xlu0 %967
    %v969 = vlaneseq
    %v970 = vshrl.u32 %v969, 7
    %v971 = vadd.s32 %v970, 24
    %972 = vset.pattern.permute.xlu0 %v971
    %973 = vperm.xlu0 %972, %v950
    %v974 = vpop.permute.xlu0 %973
    %v975 = vperm.slane %v867, 4
    %v976 = vlaneseq
    %v977 = vshrl.u32 %v976, 7
    %979 = vset.pattern.permute.xlu0 %v977
    %980 = vperm.xlu0 %979, %v975
    %v981 = vpop.permute.xlu0 %980
    %v982 = vlaneseq
    %v983 = vshrl.u32 %v982, 7
    %v984 = vadd.s32 %v983, 8
    %985 = vset.pattern.permute.xlu0 %v984
    %986 = vperm.xlu0 %985, %v975
    %v987 = vpop.permute.xlu0 %986
    %v988 = vlaneseq
    %v989 = vshrl.u32 %v988, 7
    %v990 = vadd.s32 %v989, 16
    %991 = vset.pattern.permute.xlu0 %v990
    %992 = vperm.xlu0 %991, %v975
    %v993 = vpop.permute.xlu0 %992
    %v994 = vlaneseq
    %v995 = vshrl.u32 %v994, 7
    %v996 = vadd.s32 %v995, 24
    %997 = vset.pattern.permute.xlu0 %v996
    %998 = vperm.xlu0 %997, %v975
    %v999 = vpop.permute.xlu0 %998
    %v1000 = vperm.slane %v867, 5
    %v1001 = vlaneseq
    %v1002 = vshrl.u32 %v1001, 7
    %1004 = vset.pattern.permute.xlu0 %v1002
    %1005 = vperm.xlu0 %1004, %v1000
    %v1006 = vpop.permute.xlu0 %1005
    %v1007 = vlaneseq
    %v1008 = vshrl.u32 %v1007, 7
    %v1009 = vadd.s32 %v1008, 8
    %1010 = vset.pattern.permute.xlu0 %v1009
    %1011 = vperm.xlu0 %1010, %v1000
    %v1012 = vpop.permute.xlu0 %1011
    %v1013 = vlaneseq
    %v1014 = vshrl.u32 %v1013, 7
    %v1015 = vadd.s32 %v1014, 16
    %1016 = vset.pattern.permute.xlu0 %v1015
    %1017 = vperm.xlu0 %1016, %v1000
    %v1018 = vpop.permute.xlu0 %1017
    %v1019 = vlaneseq
    %v1020 = vshrl.u32 %v1019, 7
    %v1021 = vadd.s32 %v1020, 24
    %1022 = vset.pattern.permute.xlu0 %v1021
    %1023 = vperm.xlu0 %1022, %v1000
    %v1024 = vpop.permute.xlu0 %1023
    %v1025 = vadd.f32 %v105, %v881
    %v1026 = vadd.f32 %v108, %v887
    %v1027 = vadd.f32 %v111, %v893
    %v1028 = vadd.f32 %v114, %v899
    %v1029 = vadd.f32 %v105, %v906
    %v1030 = vadd.f32 %v108, %v912
    %v1031 = vadd.f32 %v111, %v918
    %v1032 = vadd.f32 %v114, %v924
    %v1033 = vadd.f32 %v105, %v931
    %v1034 = vadd.f32 %v108, %v937
    %v1035 = vadd.f32 %v111, %v943
    %v1036 = vadd.f32 %v114, %v949
    %v1037 = vadd.f32 %v105, %v956
    %v1038 = vadd.f32 %v108, %v962
    %v1039 = vadd.f32 %v111, %v968
    %v1040 = vadd.f32 %v114, %v974
    %v1041 = vadd.f32 %v105, %v981
    %v1042 = vadd.f32 %v108, %v987
    %v1043 = vadd.f32 %v111, %v993
    %v1044 = vadd.f32 %v114, %v999
    %v1045 = vadd.f32 %v105, %v1006
    %v1046 = vadd.f32 %v108, %v1012
    %v1047 = vadd.f32 %v111, %v1018
    %v1048 = vadd.f32 %v114, %v1024
    %v1049 = vperm.slane %v848, 0
    %v1050 = vperm.slane %v870, 0
    %v1051 = vperm.slane %v871, 0
    %v1052 = vperm.slane %v872, 0
    %v1053 = vperm.slane %v873, 0
    %v1054 = vperm.slane %v874, 0
    %v1061 = vmul.f32 %v1049, %v1025
    %v1062 = vmul.f32 %v1049, %v1026
    %v1063 = vmul.f32 %v1049, %v1027
    %v1064 = vmul.f32 %v1049, %v1028
    %v1065 = vmul.f32 %v1050, %v1029
    %v1066 = vmul.f32 %v1050, %v1030
    %v1067 = vmul.f32 %v1050, %v1031
    %v1068 = vmul.f32 %v1050, %v1032
    %v1069 = vmul.f32 %v1051, %v1033
    %v1070 = vmul.f32 %v1051, %v1034
    %v1071 = vmul.f32 %v1051, %v1035
    %v1072 = vmul.f32 %v1051, %v1036
    %v1073 = vmul.f32 %v1052, %v1037
    %v1074 = vmul.f32 %v1052, %v1038
    %v1075 = vmul.f32 %v1052, %v1039
    %v1076 = vmul.f32 %v1052, %v1040
    %v1077 = vmul.f32 %v1053, %v1041
    %v1078 = vmul.f32 %v1053, %v1042
    %v1079 = vmul.f32 %v1053, %v1043
    %v1080 = vmul.f32 %v1053, %v1044
    %v1081 = vmul.f32 %v1054, %v1045
    %v1082 = vmul.f32 %v1054, %v1046
    %v1083 = vmul.f32 %v1054, %v1047
    %v1084 = vmul.f32 %v1054, %v1048
    %v1085 = vadd.f32 %v1061, %v488
    %v1086 = vadd.f32 %v1062, %v493
    %v1087 = vadd.f32 %v1063, %v498
    %v1088 = vadd.f32 %v1064, %v503
    %v1089 = vadd.f32 %v1065, %v488
    %v1090 = vadd.f32 %v1066, %v493
    %v1091 = vadd.f32 %v1067, %v498
    %v1092 = vadd.f32 %v1068, %v503
    %v1093 = vadd.f32 %v1069, %v488
    %v1094 = vadd.f32 %v1070, %v493
    %v1095 = vadd.f32 %v1071, %v498
    %v1096 = vadd.f32 %v1072, %v503
    %v1097 = vadd.f32 %v1073, %v488
    %v1098 = vadd.f32 %v1074, %v493
    %v1099 = vadd.f32 %v1075, %v498
    %v1100 = vadd.f32 %v1076, %v503
    %v1101 = vadd.f32 %v1077, %v488
    %v1102 = vadd.f32 %v1078, %v493
    %v1103 = vadd.f32 %v1079, %v498
    %v1104 = vadd.f32 %v1080, %v503
    %v1105 = vadd.f32 %v1081, %v488
    %v1106 = vadd.f32 %v1082, %v493
    %v1107 = vadd.f32 %v1083, %v498
    %v1108 = vadd.f32 %v1084, %v503
    %v1109 = vmax.f32 %v1085, 0.0
    %v1110 = vmax.f32 %v1086, 0.0
    %v1111 = vmax.f32 %v1087, 0.0
    %v1112 = vmax.f32 %v1088, 0.0
    %v1113 = vmax.f32 %v1089, 0.0
    %v1114 = vmax.f32 %v1090, 0.0
    %v1115 = vmax.f32 %v1091, 0.0
    %v1116 = vmax.f32 %v1092, 0.0
    %v1117 = vmax.f32 %v1093, 0.0
    %v1118 = vmax.f32 %v1094, 0.0
    %v1119 = vmax.f32 %v1095, 0.0
    %v1120 = vmax.f32 %v1096, 0.0
    %v1121 = vmax.f32 %v1097, 0.0
    %v1122 = vmax.f32 %v1098, 0.0
    %v1123 = vmax.f32 %v1099, 0.0
    %v1124 = vmax.f32 %v1100, 0.0
    %v1125 = vmax.f32 %v1101, 0.0
    %v1126 = vmax.f32 %v1102, 0.0
    %v1127 = vmax.f32 %v1103, 0.0
    %v1128 = vmax.f32 %v1104, 0.0
    %v1129 = vmax.f32 %v1105, 0.0
    %v1130 = vmax.f32 %v1106, 0.0
    %v1131 = vmax.f32 %v1107, 0.0
    %v1132 = vmax.f32 %v1108, 0.0
    %v1133 = vsel %vm569, %v1109, 0.0
    %v1134 = vsel %vm569, %v1113, 0.0
    %v1135 = vadd.f32 %v1133, %v1134
    %v1136 = vsel %vm569, %v1117, 0.0
    %v1137 = vadd.f32 %v1135, %v1136
    %v1138 = vsel %vm569, %v1121, 0.0
    %v1139 = vadd.f32 %v1137, %v1138
    %v1140 = vsel %vm569, %v1125, 0.0
    %v1141 = vadd.f32 %v1139, %v1140
    %v1142 = vsel %vm569, %v1129, 0.0
    %v1143 = vadd.f32 %v1141, %v1142
    %v1144 = vsel %vm569, %v1110, 0.0
    %v1145 = vsel %vm569, %v1114, 0.0
    %v1146 = vadd.f32 %v1144, %v1145
    %v1147 = vsel %vm569, %v1118, 0.0
    %v1148 = vadd.f32 %v1146, %v1147
    %v1149 = vsel %vm569, %v1122, 0.0
    %v1150 = vadd.f32 %v1148, %v1149
    %v1151 = vsel %vm569, %v1126, 0.0
    %v1152 = vadd.f32 %v1150, %v1151
    %v1153 = vsel %vm569, %v1130, 0.0
    %v1154 = vadd.f32 %v1152, %v1153
    %v1155 = vsel %vm569, %v1111, 0.0
    %v1156 = vsel %vm569, %v1115, 0.0
    %v1157 = vadd.f32 %v1155, %v1156
    %v1158 = vsel %vm569, %v1119, 0.0
    %v1159 = vadd.f32 %v1157, %v1158
    %v1160 = vsel %vm569, %v1123, 0.0
    %v1161 = vadd.f32 %v1159, %v1160
    %v1162 = vsel %vm569, %v1127, 0.0
    %v1163 = vadd.f32 %v1161, %v1162
    %v1164 = vsel %vm569, %v1131, 0.0
    %v1165 = vadd.f32 %v1163, %v1164
    %v1166 = vsel %vm569, %v1112, 0.0
    %v1167 = vsel %vm569, %v1116, 0.0
    %v1168 = vadd.f32 %v1166, %v1167
    %v1169 = vsel %vm569, %v1120, 0.0
    %v1170 = vadd.f32 %v1168, %v1169
    %v1171 = vsel %vm569, %v1124, 0.0
    %v1172 = vadd.f32 %v1170, %v1171
    %v1173 = vsel %vm569, %v1128, 0.0
    %v1174 = vadd.f32 %v1172, %v1173
    %v1175 = vsel %vm569, %v1132, 0.0
    %v1176 = vadd.f32 %v1174, %v1175
    %v1177 = vrcp.pop 6.0
    %v1178 = vmul.f32 6.0, %v1177
    %v1179 = vsub.f32 1.0, %v1178
    %v1180 = vmul.f32 %v1177, %v1179
    %v1181 = vadd.f32 %v1177, %v1180
    %vm1182 = vweird.f32 %v1177
    %v1183 = vsel %vm1182, %v1177, %v1181
    %v1184 = vmul.f32 %v1143, %v1183
    %v1185 = vmul.f32 %v1154, %v1183
    %v1186 = vmul.f32 %v1165, %v1183
    %v1187 = vmul.f32 %v1176, %v1183
    %v1188 = vadd.f32 %v1184, %v66
    %v1189 = vadd.f32 %v1185, %v67
    %v1190 = vadd.f32 %v1186, %v68
    %v1191 = vadd.f32 %v1187, %v69
    %v1192 = vmul.f32 %v1188, %v1188
    %v1193 = vmul.f32 %v1189, %v1189
    %v1194 = vmul.f32 %v1190, %v1190
    %v1195 = vmul.f32 %v1191, %v1191
    %v1196 = vsel %vm569, %v1192, 0.0
    %v1197 = vsel %vm569, %v1193, 0.0
    %v1198 = vadd.f32 %v1196, %v1197
    %v1199 = vsel %vm569, %v1194, 0.0
    %v1200 = vadd.f32 %v1198, %v1199
    %v1201 = vsel %vm569, %v1195, 0.0
    %v1202 = vadd.f32 %v1200, %v1201
    %v1203 = vrot.slane %v1202, 4
    %v1204 = vadd.f32 %v1202, %v1203
    %v1205 = vrot.slane %v1204, 2
    %v1206 = vadd.f32 %v1204, %v1205
    %v1207 = vrot.slane %v1206, 1
    %v1208 = vadd.f32 %v1206, %v1207
    %v1209 = vrsqrt.pop %v1208
    %v1210 = vmul.f32 %v1209, %v1208
    %v1211 = vmul.f32 %v1210, %v1209
    %v1212 = vmul.f32 0.5, %v1211
    %v1213 = vsub.f32 1.5, %v1212
    %v1214 = vmul.f32 %v1209, %v1213
    %v1215 = vmul.f32 %v1208, %v1214
    %vm1216 = vcmp.eq.f32.partialorder %v1208, inf
    %v1217 = vsel %vm1216, %v1208, %v1215
    %vm1218 = vcmp.eq.f32.partialorder %v1208, 0.0
    %v1219 = vand.u32 %v1208, 2147483648
    %v1220 = vsel %vm1218, %v1219, %v1217
    %v1221 = vadd.f32 %v1220, 1e-08
    %v1222 = vrcp.pop %v1221
    %v1223 = vmul.f32 %v1221, %v1222
    %v1224 = vsub.f32 1.0, %v1223
    %v1225 = vmul.f32 %v1222, %v1224
    %v1226 = vadd.f32 %v1222, %v1225
    %vm1227 = vweird.f32 %v1221
    %vm1228 = vweird.f32 %v1222
    %vm1229 = vmor %vm1227, %vm1228
    %v1230 = vsel %vm1229, %v1222, %v1226
    %v1231 = vand.u32 2147483647, %v1221
    %vm1232 = vcmp.eq.f32.partialorder %v1231, 8.507059e+37
    %v1233 = vand.u32 %v1221, 2147483648
    %v1234 = vor.u32 1.1754944e-38, %v1233
    %v1235 = vsel %vm1232, %v1234, %v1230
    %v1236 = vmul.f32 %v1188, %v1235
    %v1237 = vmul.f32 %v1189, %v1235
    %v1238 = vmul.f32 %v1190, %v1235
    %v1239 = vmul.f32 %v1191, %v1235
    %1240 = vmatpush.msra.mxu0 0.0
    %1241 = vmatpush.msra.mxu0 0.0
    %1242 = vmatpush.msra.mxu0 0.0
    %1243 = vmatpush.msra.mxu0 0.0
    %1244 = vmatpush.msra.mxu0 0.0
    %1245 = vmatpush.msra.mxu0 0.0
    %1246 = vmatpush.msra.mxu0 0.0
    %1247 = vmatpush.msra.mxu0 0.0
    %1248 = vmatpush.msra.mxu0 0.0
    %1249 = vmatpush.msra.mxu0 0.0
    %1250 = vmatpush.msra.mxu0 0.0
    %1251 = vmatpush.msra.mxu0 0.0
    %1252 = vmatpush.msra.mxu0 %v1239
    %1253 = vmatpush.msra.mxu0 %v1238
    %1254 = vmatpush.msra.mxu0 %v1237
    %1255 = vmatpush.msra.mxu0 %v1236
    %1256 = vmatmul.f32.gmra.mxu0 %v714
    %v1257 = vpop.f32.mrf.mxu0
    %v1258 = vadd.f32 %v696, %v1257
    %1259 = vmatmul.f32.gmra.mxu0 %v717
    %v1260 = vpop.f32.mrf.mxu0
    %v1261 = vadd.f32 %v701, %v1260
    %1262 = vmatmul.f32.gmra.mxu0 %v720
    %v1263 = vpop.f32.mrf.mxu0
    %v1264 = vadd.f32 %v706, %v1263
    %1265 = vmatmul.f32.gmra.mxu0 %v723
    %v1266 = vpop.f32.mrf.mxu0
    %v1267 = vadd.f32 %v711, %v1266
    %1268 = vdwg.mxu0
    %v1269 = vmax.f32 %v1258, 0.0
    %v1270 = vmax.f32 %v1261, 0.0
    %v1271 = vmax.f32 %v1264, 0.0
    %v1272 = vmax.f32 %v1267, 0.0
    %1273 = vmatpush.msra.mxu0 0.0
    %1274 = vmatpush.msra.mxu0 0.0
    %1275 = vmatpush.msra.mxu0 0.0
    %1276 = vmatpush.msra.mxu0 0.0
    %1277 = vmatpush.msra.mxu0 0.0
    %1278 = vmatpush.msra.mxu0 0.0
    %1279 = vmatpush.msra.mxu0 0.0
    %1280 = vmatpush.msra.mxu0 0.0
    %1281 = vmatpush.msra.mxu0 0.0
    %1282 = vmatpush.msra.mxu0 0.0
    %1283 = vmatpush.msra.mxu0 0.0
    %1284 = vmatpush.msra.mxu0 0.0
    %1285 = vmatpush.msra.mxu0 %v1272
    %1286 = vmatpush.msra.mxu0 %v1271
    %1287 = vmatpush.msra.mxu0 %v1270
    %1288 = vmatpush.msra.mxu0 %v1269
    %1289 = vmatmul.f32.gmra.mxu0 %v765
    %v1290 = vpop.f32.mrf.mxu0
    %v1291 = vadd.f32 %v763, %v1290
    %1292 = vdwg.mxu0
    %v1293 = vxor.u32 %v1291, 2147483648
    %v1294 = vmul.f32 %v1293, 1.442695
    %v1295 = vpow.pop %v1294
    %v1296 = vadd.f32 %v1295, 1.0
    %v1297 = vrcp.pop %v1296
    %v1298 = vmul.f32 %v1296, %v1297
    %v1299 = vsub.f32 1.0, %v1298
    %v1300 = vmul.f32 %v1297, %v1299
    %v1301 = vadd.f32 %v1297, %v1300
    %vm1302 = vweird.f32 %v1296
    %vm1303 = vweird.f32 %v1297
    %vm1304 = vmor %vm1302, %vm1303
    %v1305 = vsel %vm1304, %v1297, %v1301
    %v1306 = vand.u32 2147483647, %v1296
    %vm1307 = vcmp.eq.f32.partialorder %v1306, 8.507059e+37
    %v1308 = vand.u32 %v1296, 2147483648
    %v1309 = vor.u32 1.1754944e-38, %v1308
    %v1310 = vsel %vm1307, %v1309, %v1305
    %v1311 = vmul.f32 1.0, %v1310
    %v1313 = vrot.slane %v1311, 7
    %vm1315 = vcmask 1040384
    %v1316 = vsel %vm1315, %v805, %v1313
    %vm1317 = vcmask 25600
    %1318 = vst.msk [vmem:[#allocation8] sm:$0x3] %vm1317, %v1316
    // Predicated region
    $region50: #{tpu_custom_call.1} parent=1 // pred_check
      _
    $region51: #{tpu_custom_call.1} parent=1 // pred_check_branch
      %1320 = sbr.rel (0) target = $region53
    $region52: #{tpu_custom_call.1} parent=1 // pred_region
      %1322 = vsyncadd [#allocation5], 0
      %s1324 = sshll.u32 [#allocation8], 4
      %s1325 = int_to_ptr.vmem [resolvable:$true] %s1324
      %s1326 = sshll.u32 %s10, 4
      %s1327 = int_to_ptr.hbm [resolvable:$true] %s1326
      %1329 = dma.vmem_to_hbm [thread:$0]  %s1325, 32, %s1327, [#allocation5]
    $region53: #{tpu_custom_call.1} parent=1 // pred_fallthru
      _
    // Predicated region
    $region54: #{tpu_custom_call.1} parent=1 // pred_check
      _
    $region55: #{tpu_custom_call.1} parent=1 // pred_check_branch
      %1331 = sbr.rel (0) target = $region57
    $region56: #{tpu_custom_call.1} parent=1 // pred_region
      %1333 = dma.done [#allocation5], 32
    $region57: #{tpu_custom_call.1} parent=1 // pred_fallthru
      _
    %1334 = vsyncpa [#allocation4], 1
    %1335 = vsyncpa [#allocation7], 1
    %1336 = vsyncpa [#allocation5], 1

</llo_original>
